<compile_context>
chip_gen: v7x
topology: tpu7x:2x2x1
jax: 0.10.0
libtpu: 0.0.40
codegen_flags: <defaults>
</compile_context>

<pallas_src>
import numpy as np
import jax
import jax.numpy as jnp
from jax import lax
from jax.experimental import pallas as pl
from jax.experimental.pallas import tpu as pltpu


# ----------------------------------------------------------------------------
# Host-side helpers (parameter / constant construction — glue, not hot path)
# ----------------------------------------------------------------------------
def _interp_matrix(out_size: int, in_size: int, mode: str) -> np.ndarray:
    """Row-stochastic matrix M (out,in) s.t. upsampled = M @ signal (PyTorch conv.)"""
    m = np.zeros((out_size, in_size), dtype=np.float32)
    if mode == "nearest":
        src = (np.arange(out_size) * in_size) // out_size
        m[np.arange(out_size), src] = 1.0
    elif mode in ("bilinear", "linear", "trilinear"):
        scale = in_size / out_size
        src = (np.arange(out_size) + 0.5) * scale - 0.5      # align_corners=False
        src = np.maximum(src, 0.0)
        i0 = np.minimum(np.floor(src).astype(np.int64), in_size - 1)
        i1 = np.minimum(i0 + 1, in_size - 1)
        lam = (src - i0).astype(np.float32)
        np.add.at(m, (np.arange(out_size), i0), 1.0 - lam)
        np.add.at(m, (np.arange(out_size), i1), lam)
    else:
        raise ValueError(f"unsupported interpolate_mode: {mode}")
    return m


def _upsample_matrix_flatpad(h, w, wp, sh, sw, mode) -> np.ndarray:
    """U (Lc, sH*sW) mapping the padded-flat conv window straight to the
    upsampled plane for ALL channels at once (out = h2_window @ U).
    Rows corresponding to pad columns are zero, so junk there never contributes."""
    uh = _interp_matrix(sh, h, mode)        # (sh, h)
    uw = _interp_matrix(sw, w, mode)        # (sw, w)
    lc = h * wp - 2                         # == (h-1)*wp + w
    m = np.zeros((lc, sh * sw), dtype=np.float32)
    for i in range(h):
        for j in range(w):
            # element [p*sw + q] = uh[p, i] * uw[q, j]
            m[i * wp + j, :] = np.kron(uh[:, i], uw[:, j])
    return m


# ----------------------------------------------------------------------------
# Pallas kernel: one batch element per grid step (batch axis is 'parallel')
# ----------------------------------------------------------------------------
def _ukan_up_kernel(x_ref,        # (Cin, Hp*Wp)  padded-flat input slab, bf16  VMEM
                    w1_ref,       # (C1, 9*Cin)   conv1 fused tap weights, bf16 VMEM
                    b1_ref,       # (C1, 1)       f32                           VMEM
                    w2_ref,       # (Cout, 9*C1)  conv2 fused tap weights, bf16 VMEM
                    b2_ref,       # (Cout, 1)     f32                           VMEM
                    up_ref,       # (Lc, sH*sW)   fused upsample matrix, bf16   VMEM
                    vmask_ref,    # (1, Lc)       1.0 at valid cols, else 0     VMEM
                    o_ref,        # (Cout, sH*sW) f32                           VMEM
                    col_ref,      # (9*Cin, Lc)   im2col staging scratch, bf16  VMEM
                    h1_ref):      # (C1, Hp*Wp)   padded-flat h1 scratch, bf16  VMEM
    L = x_ref.shape[1]            # Hp * Wp
    Lc = up_ref.shape[0]          # (H-1)*Wp + W
    base = (L - Lc) // 2          # == Wp + 1
    wp = base - 1                 # padded row stride Wp
    c1 = w1_ref.shape[0]
    rows = col_ref.shape[0] // 9  # channels per tap (== Cin == C1)

    # tap t = ky*3 + kx  ->  lane offset within the padded-flat slab
    offs = [(ky - 1) * wp + (kx - 1) for ky in range(3) for kx in range(3)]

    def conv3x3_relu(read_window, w_ref, b_ref):
        # im2col on sublanes: stage the 9 lane-shifted windows once (bf16), then
        # ONE MXU matmul with K = 9*Cin and f32 accumulation.
        for t, off in enumerate(offs):
            col_ref[pl.ds(t * rows, rows), :] = read_window(off)
        acc = jnp.dot(w_ref[...], col_ref[...],
                      preferred_element_type=jnp.float32)
        return jnp.maximum(acc + b_ref[...], 0.0)          # f32 (Cout_stage, Lc)

    # conv1 (Cin -> C1) + ReLU: taps are static lane-offset windows of the
    # pre-padded input slab (the conv's zero padding comes from the pad rows/cols).
    h1 = conv3x3_relu(lambda off: x_ref[:, pl.ds(base + off, Lc)],
                      w1_ref, b1_ref)

    # Re-stage h1 on the padded-flat grid (bf16) so conv2 sees proper zero padding:
    #   * interior pad columns are zeroed by the valid-column mask,
    #   * only the two pad strips (top pad row + corner / bottom pad row + corner)
    #     need explicit zeroing — not the whole scratch.
    zstrip = jnp.zeros((c1, base), h1_ref.dtype)
    h1_ref[:, pl.ds(0, base)] = zstrip
    h1_ref[:, pl.ds(base + Lc, base)] = zstrip
    h1_ref[:, pl.ds(base, Lc)] = (h1 * vmask_ref[...]).astype(h1_ref.dtype)

    # conv2 (C1 -> Cout) + ReLU.
    h2 = conv3x3_relu(lambda off: h1_ref[:, pl.ds(base + off, Lc)],
                      w2_ref, b2_ref)

    # Fused nearest/bilinear upsample (both spatial axes, all channels) as one
    # MXU matmul (rows of U at pad columns are zero), then the final ReLU.
    up = jnp.dot(h2.astype(up_ref.dtype), up_ref[...],
                 preferred_element_type=jnp.float32)       # (Cout, sH*sW)
    o_ref[...] = jnp.maximum(up, 0.0).astype(o_ref.dtype)


# ----------------------------------------------------------------------------
# Wrapper
# ----------------------------------------------------------------------------
def ukan_upsample_block(x, params, *, stride, interpolate_mode: str):
    """x: (N, Cin, H, W) float32 NCHW.  Returns (N, Cout, H*stride, W*stride)."""
    w1, b1, w2, b2 = params               # PyTorch layouts: w (Cout, Cin, 3, 3)
    n, cin, h, w = x.shape
    c1 = w1.shape[0]
    cout = w2.shape[0]
    # MultiBasicConvBlock(reverse_order=True): conv1 is in->in, conv2 is in->out.
    assert w1.shape[1] == cin and c1 == cin and w2.shape[1] == c1

    if isinstance(stride, (tuple, list)):
        sy, sx = int(stride[0]), int(stride[1])
    else:
        sy = sx = int(stride)
    sh, sw = h * sy, w * sx
    hp, wp = h + 2, w + 2
    L = hp * wp
    Lc = h * wp - 2

    # Host-built constants (bf16 MXU operands; stride-2 bilinear coeffs are exact).
    up = jnp.asarray(_upsample_matrix_flatpad(h, w, wp, sh, sw, interpolate_mode),
                     dtype=jnp.bfloat16)
    r = np.arange(Lc)
    vmask = jnp.asarray(((r % wp) < w).astype(np.float32)[None, :])   # (1, Lc)

    # Layout plumbing on the wrapper side (cheap XLA ops):
    #   padded-flat bf16 input (N, Cin, Hp*Wp);
    #   fused tap weights (Cout, 9*Cin) with column index = (ky*3+kx)*Cin + ci.
    xp = jnp.pad(x.astype(jnp.bfloat16),
                 ((0, 0), (0, 0), (1, 1), (1, 1))).reshape(n, cin, L)
    w1f = jnp.transpose(w1, (0, 2, 3, 1)).reshape(c1, 9 * cin).astype(jnp.bfloat16)
    w2f = jnp.transpose(w2, (0, 2, 3, 1)).reshape(cout, 9 * c1).astype(jnp.bfloat16)
    b1c = b1.astype(jnp.float32).reshape(c1, 1)
    b2c = b2.astype(jnp.float32).reshape(cout, 1)

    flops = n * (2 * (9 * cin) * c1 * Lc          # conv1
                 + 2 * (9 * c1) * cout * Lc       # conv2
                 + 2 * Lc * cout * sh * sw)       # fused upsample
    bytes_accessed = (xp.size * 2 + w1f.size * 2 + w2f.size * 2
                      + b1c.size * 4 + b2c.size * 4 + up.size * 2
                      + vmask.size * 4 + n * cout * sh * sw * 4)

    out_flat = pl.pallas_call(
        _ukan_up_kernel,
        out_shape=jax.ShapeDtypeStruct((n, cout, sh * sw), jnp.float32),
        grid=(n,),
        in_specs=[
            pl.BlockSpec((None, cin, L), lambda i: (i, 0, 0)),     # x (per image)
            pl.BlockSpec((c1, 9 * cin), lambda i: (0, 0)),         # conv1 fused taps
            pl.BlockSpec((c1, 1), lambda i: (0, 0)),               # conv1 bias
            pl.BlockSpec((cout, 9 * c1), lambda i: (0, 0)),        # conv2 fused taps
            pl.BlockSpec((cout, 1), lambda i: (0, 0)),             # conv2 bias
            pl.BlockSpec((Lc, sh * sw), lambda i: (0, 0)),         # upsample matrix
            pl.BlockSpec((1, Lc), lambda i: (0, 0)),               # valid-column mask
        ],
        out_specs=pl.BlockSpec((None, cout, sh * sw), lambda i: (i, 0, 0)),
        scratch_shapes=[
            pltpu.VMEM((9 * cin, Lc), jnp.bfloat16),   # im2col staging (reused by both convs)
            pltpu.VMEM((c1, L), jnp.bfloat16),         # padded-flat h1
        ],
        compiler_params=pltpu.CompilerParams(dimension_semantics=("parallel",)),
        cost_estimate=pl.CostEstimate(flops=int(flops), transcendentals=0,
                                      bytes_accessed=int(bytes_accessed)),
    )(xp, w1f, b1c, w2f, b2c, up, vmask)

    return out_flat.reshape(n, cout, sh, sw)


# ----------------------------------------------------------------------------
# Pure-JAX reference (for validation only, f32)
# ----------------------------------------------------------------------------
def reference_forward(x, w1, b1, w2, b2, stride, mode):
    def conv_relu(hh, wgt, bias):
        y = lax.conv_general_dilated(
            hh, wgt, window_strides=(1, 1), padding=((1, 1), (1, 1)),
            dimension_numbers=("NCHW", "OIHW", "NCHW"))
        return jax.nn.relu(y + bias[None, :, None, None])

    y = conv_relu(x, w1, b1)
    y = conv_relu(y, w2, b2)
    _, _, h, w = y.shape
    sy, sx = (stride, stride) if isinstance(stride, int) else stride
    uh = jnp.asarray(_interp_matrix(h * sy, h, mode))
    uw = jnp.asarray(_interp_matrix(w * sx, w, mode))
    y = jnp.einsum("ph,nchw->ncpw", uh, y)
    y = jnp.einsum("qw,ncpw->ncpq", uw, y)
    return jax.nn.relu(y)


if __name__ == "__main__":
    N, CIN, COUT, H, W = 2, 4, 4, 16, 16
    STRIDE = 2
    MODE = "bilinear"       # UKAN default; "nearest" also supported

    key = jax.random.PRNGKey(0)
    kx, k1, k2, k3, k4 = jax.random.split(key, 5)
    x = jax.random.normal(kx, (N, CIN, H, W), jnp.float32)
    # Deterministic synthetic parameters (shapes per module __init__):
    #   conv1: Conv(in->in, 3x3), conv2: Conv(in->out, 3x3)   (reverse_order=True)
    w1 = jax.random.normal(k1, (CIN, CIN, 3, 3), jnp.float32) * 0.2
    b1 = jax.random.normal(k2, (CIN,), jnp.float32) * 0.1
    w2 = jax.random.normal(k3, (COUT, CIN, 3, 3), jnp.float32) * 0.2
    b2 = jax.random.normal(k4, (COUT,), jnp.float32) * 0.1

    out = ukan_upsample_block(x, (w1, b1, w2, b2),
                              stride=STRIDE, interpolate_mode=MODE)
    out = jax.block_until_ready(out)

    ref = reference_forward(x, w1, b1, w2, b2, STRIDE, MODE)
    assert out.shape == (N, COUT, H * STRIDE, W * STRIDE), out.shape
    # bf16 MXU operands (f32 accumulation) vs f32 reference -> loosened tolerance.
    if not np.allclose(np.asarray(out), np.asarray(ref), atol=3e-2, rtol=3e-2):
        raise AssertionError(
            f"mismatch vs reference, max|err|={float(jnp.max(jnp.abs(out - ref)))}")
    print("KERNEL_OK")
</pallas_src>

<mosaic_0001>
module attributes {stable_mosaic.version = 11 : i64} {
  func.func @_ukan_up_kernel(%arg0: i32, %arg1: memref<1x4x324xbf16, #tpu.memory_space<vmem>>, %arg2: memref<4x36xbf16, #tpu.memory_space<vmem>>, %arg3: memref<4x1xf32, #tpu.memory_space<vmem>>, %arg4: memref<4x36xbf16, #tpu.memory_space<vmem>>, %arg5: memref<4x1xf32, #tpu.memory_space<vmem>>, %arg6: memref<286x1024xbf16, #tpu.memory_space<vmem>>, %arg7: memref<1x286xf32, #tpu.memory_space<vmem>>, %arg8: memref<1x4x1024xf32, #tpu.memory_space<vmem>>, %arg9: memref<36x286xbf16, #tpu.memory_space<vmem>>, %arg10: memref<4x324xbf16, #tpu.memory_space<vmem>>) attributes {dimension_semantics = [#tpu.dimension_semantics<parallel>], iteration_bounds = array<i64: 2>, scalar_prefetch = 0 : i64, scratch_operands = 2 : i64, tpu.core_type = #tpu.core_type<tc>, window_params = [{transform_indices = @transform_0, window_bounds = array<i64: 1, 4, 324>}, {pipeline_mode = #tpu.pipeline_mode<synchronous>, transform_indices = @transform_1, window_bounds = array<i64: 4, 36>}, {pipeline_mode = #tpu.pipeline_mode<synchronous>, transform_indices = @transform_2, window_bounds = array<i64: 4, 1>}, {pipeline_mode = #tpu.pipeline_mode<synchronous>, transform_indices = @transform_3, window_bounds = array<i64: 4, 36>}, {pipeline_mode = #tpu.pipeline_mode<synchronous>, transform_indices = @transform_4, window_bounds = array<i64: 4, 1>}, {pipeline_mode = #tpu.pipeline_mode<synchronous>, transform_indices = @transform_5, window_bounds = array<i64: 286, 1024>}, {pipeline_mode = #tpu.pipeline_mode<synchronous>, transform_indices = @transform_6, window_bounds = array<i64: 1, 286>}, {transform_indices = @transform_7, window_bounds = array<i64: 1, 4, 1024>}]} {
    %c0 = arith.constant 0 : index
    %c0_0 = arith.constant 0 : index
    %c0_1 = arith.constant 0 : index
    %0 = vector.load %arg1[%c0, %c0_0, %c0_1] : memref<1x4x324xbf16, #tpu.memory_space<vmem>>, vector<1x4x286xbf16>
    %1 = vector.shape_cast %0 : vector<1x4x286xbf16> to vector<4x286xbf16>
    %c0_2 = arith.constant 0 : index
    %c0_3 = arith.constant 0 : index
    %2 = vector.load %arg9[%c0_2, %c0_3] : memref<36x286xbf16, #tpu.memory_space<vmem>>, vector<4x286xbf16>
    tpu.vector_store %arg9[%c0_2, %c0_3], %1 {strides = array<i32>} : memref<36x286xbf16, #tpu.memory_space<vmem>>, vector<4x286xbf16>,
    %c0_4 = arith.constant 0 : index
    %c0_5 = arith.constant 0 : index
    %c1 = arith.constant 1 : index
    %3 = vector.load %arg1[%c0_4, %c0_5, %c1] : memref<1x4x324xbf16, #tpu.memory_space<vmem>>, vector<1x4x286xbf16>
    %4 = vector.shape_cast %3 : vector<1x4x286xbf16> to vector<4x286xbf16>
    %c4 = arith.constant 4 : index
    %c0_6 = arith.constant 0 : index
    %5 = vector.load %arg9[%c4, %c0_6] : memref<36x286xbf16, #tpu.memory_space<vmem>>, vector<4x286xbf16>
    tpu.vector_store %arg9[%c4, %c0_6], %4 {strides = array<i32>} : memref<36x286xbf16, #tpu.memory_space<vmem>>, vector<4x286xbf16>,
    %c0_7 = arith.constant 0 : index
    %c0_8 = arith.constant 0 : index
    %c2 = arith.constant 2 : index
    %6 = vector.load %arg1[%c0_7, %c0_8, %c2] : memref<1x4x324xbf16, #tpu.memory_space<vmem>>, vector<1x4x286xbf16>
    %7 = vector.shape_cast %6 : vector<1x4x286xbf16> to vector<4x286xbf16>
    %c8 = arith.constant 8 : index
    %c0_9 = arith.constant 0 : index
    %8 = vector.load %arg9[%c8, %c0_9] : memref<36x286xbf16, #tpu.memory_space<vmem>>, vector<4x286xbf16>
    tpu.vector_store %arg9[%c8, %c0_9], %7 {strides = array<i32>} : memref<36x286xbf16, #tpu.memory_space<vmem>>, vector<4x286xbf16>,
    %c0_10 = arith.constant 0 : index
    %c0_11 = arith.constant 0 : index
    %c18 = arith.constant 18 : index
    %9 = vector.load %arg1[%c0_10, %c0_11, %c18] : memref<1x4x324xbf16, #tpu.memory_space<vmem>>, vector<1x4x286xbf16>
    %10 = vector.shape_cast %9 : vector<1x4x286xbf16> to vector<4x286xbf16>
    %c12 = arith.constant 12 : index
    %c0_12 = arith.constant 0 : index
    %11 = vector.load %arg9[%c12, %c0_12] : memref<36x286xbf16, #tpu.memory_space<vmem>>, vector<4x286xbf16>
    tpu.vector_store %arg9[%c12, %c0_12], %10 {strides = array<i32>} : memref<36x286xbf16, #tpu.memory_space<vmem>>, vector<4x286xbf16>,
    %c0_13 = arith.constant 0 : index
    %c0_14 = arith.constant 0 : index
    %c19 = arith.constant 19 : index
    %12 = vector.load %arg1[%c0_13, %c0_14, %c19] : memref<1x4x324xbf16, #tpu.memory_space<vmem>>, vector<1x4x286xbf16>
    %13 = vector.shape_cast %12 : vector<1x4x286xbf16> to vector<4x286xbf16>
    %c16 = arith.constant 16 : index
    %c0_15 = arith.constant 0 : index
    %14 = vector.load %arg9[%c16, %c0_15] : memref<36x286xbf16, #tpu.memory_space<vmem>>, vector<4x286xbf16>
    tpu.vector_store %arg9[%c16, %c0_15], %13 {strides = array<i32>} : memref<36x286xbf16, #tpu.memory_space<vmem>>, vector<4x286xbf16>,
    %c0_16 = arith.constant 0 : index
    %c0_17 = arith.constant 0 : index
    %c20 = arith.constant 20 : index
    %15 = vector.load %arg1[%c0_16, %c0_17, %c20] : memref<1x4x324xbf16, #tpu.memory_space<vmem>>, vector<1x4x286xbf16>
    %16 = vector.shape_cast %15 : vector<1x4x286xbf16> to vector<4x286xbf16>
    %c20_18 = arith.constant 20 : index
    %c0_19 = arith.constant 0 : index
    %17 = vector.load %arg9[%c20_18, %c0_19] : memref<36x286xbf16, #tpu.memory_space<vmem>>, vector<4x286xbf16>
    tpu.vector_store %arg9[%c20_18, %c0_19], %16 {strides = array<i32>} : memref<36x286xbf16, #tpu.memory_space<vmem>>, vector<4x286xbf16>,
    %c0_20 = arith.constant 0 : index
    %c0_21 = arith.constant 0 : index
    %c36 = arith.constant 36 : index
    %18 = vector.load %arg1[%c0_20, %c0_21, %c36] : memref<1x4x324xbf16, #tpu.memory_space<vmem>>, vector<1x4x286xbf16>
    %19 = vector.shape_cast %18 : vector<1x4x286xbf16> to vector<4x286xbf16>
    %c24 = arith.constant 24 : index
    %c0_22 = arith.constant 0 : index
    %20 = vector.load %arg9[%c24, %c0_22] : memref<36x286xbf16, #tpu.memory_space<vmem>>, vector<4x286xbf16>
    tpu.vector_store %arg9[%c24, %c0_22], %19 {strides = array<i32>} : memref<36x286xbf16, #tpu.memory_space<vmem>>, vector<4x286xbf16>,
    %c0_23 = arith.constant 0 : index
    %c0_24 = arith.constant 0 : index
    %c37 = arith.constant 37 : index
    %21 = vector.load %arg1[%c0_23, %c0_24, %c37] : memref<1x4x324xbf16, #tpu.memory_space<vmem>>, vector<1x4x286xbf16>
    %22 = vector.shape_cast %21 : vector<1x4x286xbf16> to vector<4x286xbf16>
    %c28 = arith.constant 28 : index
    %c0_25 = arith.constant 0 : index
    %23 = vector.load %arg9[%c28, %c0_25] : memref<36x286xbf16, #tpu.memory_space<vmem>>, vector<4x286xbf16>
    tpu.vector_store %arg9[%c28, %c0_25], %22 {strides = array<i32>} : memref<36x286xbf16, #tpu.memory_space<vmem>>, vector<4x286xbf16>,
    %c0_26 = arith.constant 0 : index
    %c0_27 = arith.constant 0 : index
    %c38 = arith.constant 38 : index
    %24 = vector.load %arg1[%c0_26, %c0_27, %c38] : memref<1x4x324xbf16, #tpu.memory_space<vmem>>, vector<1x4x286xbf16>
    %25 = vector.shape_cast %24 : vector<1x4x286xbf16> to vector<4x286xbf16>
    %c32 = arith.constant 32 : index
    %c0_28 = arith.constant 0 : index
    %26 = vector.load %arg9[%c32, %c0_28] : memref<36x286xbf16, #tpu.memory_space<vmem>>, vector<4x286xbf16>
    tpu.vector_store %arg9[%c32, %c0_28], %25 {strides = array<i32>} : memref<36x286xbf16, #tpu.memory_space<vmem>>, vector<4x286xbf16>,
    %c0_29 = arith.constant 0 : index
    %c0_30 = arith.constant 0 : index
    %27 = vector.load %arg2[%c0_29, %c0_30] : memref<4x36xbf16, #tpu.memory_space<vmem>>, vector<4x36xbf16>
    %c0_31 = arith.constant 0 : index
    %c0_32 = arith.constant 0 : index
    %28 = vector.load %arg9[%c0_31, %c0_32] : memref<36x286xbf16, #tpu.memory_space<vmem>>, vector<36x286xbf16>
    %cst = arith.constant dense<0.000000e+00> : vector<4x286xf32>
    %29 = tpu.matmul %27, %28, %cst {dimension_numbers = #tpu.dot_dimension_numbers<[1], [0], [0], [1], [0, 0, 1, 1], [], []>} : vector<4x36xbf16>, vector<36x286xbf16>, vector<4x286xf32> -> vector<4x286xf32>
    %c0_33 = arith.constant 0 : index
    %c0_34 = arith.constant 0 : index
    %30 = vector.load %arg3[%c0_33, %c0_34] : memref<4x1xf32, #tpu.memory_space<vmem>>, vector<4x1xf32>
    %31 = vector.broadcast %30 : vector<4x1xf32> to vector<4x286xf32>
    %32 = arith.addf %29, %31 : vector<4x286xf32>
    %cst_35 = arith.constant 0.000000e+00 : f32
    %33 = vector.broadcast %cst_35 : f32 to vector<4x286xf32>
    %34 = arith.maximumf %32, %33 : vector<4x286xf32>
    %cst_36 = arith.constant 0.000000e+00 : bf16
    %35 = vector.broadcast %cst_36 : bf16 to vector<4x19xbf16>
    %c0_37 = arith.constant 0 : index
    %c0_38 = arith.constant 0 : index
    %36 = vector.load %arg10[%c0_37, %c0_38] : memref<4x324xbf16, #tpu.memory_space<vmem>>, vector<4x19xbf16>
    tpu.vector_store %arg10[%c0_37, %c0_38], %35 {strides = array<i32>} : memref<4x324xbf16, #tpu.memory_space<vmem>>, vector<4x19xbf16>,
    %c0_39 = arith.constant 0 : index
    %c305 = arith.constant 305 : index
    %37 = vector.load %arg10[%c0_39, %c305] : memref<4x324xbf16, #tpu.memory_space<vmem>>, vector<4x19xbf16>
    tpu.vector_store %arg10[%c0_39, %c305], %35 {strides = array<i32>} : memref<4x324xbf16, #tpu.memory_space<vmem>>, vector<4x19xbf16>,
    %c0_40 = arith.constant 0 : index
    %c0_41 = arith.constant 0 : index
    %38 = vector.load %arg7[%c0_40, %c0_41] : memref<1x286xf32, #tpu.memory_space<vmem>>, vector<1x286xf32>
    %39 = vector.broadcast %38 : vector<1x286xf32> to vector<4x286xf32>
    %40 = arith.mulf %34, %39 : vector<4x286xf32>
    %41 = arith.truncf %40 : vector<4x286xf32> to vector<4x286xbf16>
    %c0_42 = arith.constant 0 : index
    %c19_43 = arith.constant 19 : index
    %42 = vector.load %arg10[%c0_42, %c19_43] : memref<4x324xbf16, #tpu.memory_space<vmem>>, vector<4x286xbf16>
    tpu.vector_store %arg10[%c0_42, %c19_43], %41 {strides = array<i32>} : memref<4x324xbf16, #tpu.memory_space<vmem>>, vector<4x286xbf16>,
    %c0_44 = arith.constant 0 : index
    %c0_45 = arith.constant 0 : index
    %43 = vector.load %arg10[%c0_44, %c0_45] : memref<4x324xbf16, #tpu.memory_space<vmem>>, vector<4x286xbf16>
    %c0_46 = arith.constant 0 : index
    %c0_47 = arith.constant 0 : index
    %44 = vector.load %arg9[%c0_46, %c0_47] : memref<36x286xbf16, #tpu.memory_space<vmem>>, vector<4x286xbf16>
    tpu.vector_store %arg9[%c0_46, %c0_47], %43 {strides = array<i32>} : memref<36x286xbf16, #tpu.memory_space<vmem>>, vector<4x286xbf16>,
    %c0_48 = arith.constant 0 : index
    %c1_49 = arith.constant 1 : index
    %45 = vector.load %arg10[%c0_48, %c1_49] : memref<4x324xbf16, #tpu.memory_space<vmem>>, vector<4x286xbf16>
    %c4_50 = arith.constant 4 : index
    %c0_51 = arith.constant 0 : index
    %46 = vector.load %arg9[%c4_50, %c0_51] : memref<36x286xbf16, #tpu.memory_space<vmem>>, vector<4x286xbf16>
    tpu.vector_store %arg9[%c4_50, %c0_51], %45 {strides = array<i32>} : memref<36x286xbf16, #tpu.memory_space<vmem>>, vector<4x286xbf16>,
    %c0_52 = arith.constant 0 : index
    %c2_53 = arith.constant 2 : index
    %47 = vector.load %arg10[%c0_52, %c2_53] : memref<4x324xbf16, #tpu.memory_space<vmem>>, vector<4x286xbf16>
    %c8_54 = arith.constant 8 : index
    %c0_55 = arith.constant 0 : index
    %48 = vector.load %arg9[%c8_54, %c0_55] : memref<36x286xbf16, #tpu.memory_space<vmem>>, vector<4x286xbf16>
    tpu.vector_store %arg9[%c8_54, %c0_55], %47 {strides = array<i32>} : memref<36x286xbf16, #tpu.memory_space<vmem>>, vector<4x286xbf16>,
    %c0_56 = arith.constant 0 : index
    %c18_57 = arith.constant 18 : index
    %49 = vector.load %arg10[%c0_56, %c18_57] : memref<4x324xbf16, #tpu.memory_space<vmem>>, vector<4x286xbf16>
    %c12_58 = arith.constant 12 : index
    %c0_59 = arith.constant 0 : index
    %50 = vector.load %arg9[%c12_58, %c0_59] : memref<36x286xbf16, #tpu.memory_space<vmem>>, vector<4x286xbf16>
    tpu.vector_store %arg9[%c12_58, %c0_59], %49 {strides = array<i32>} : memref<36x286xbf16, #tpu.memory_space<vmem>>, vector<4x286xbf16>,
    %c0_60 = arith.constant 0 : index
    %c19_61 = arith.constant 19 : index
    %51 = vector.load %arg10[%c0_60, %c19_61] : memref<4x324xbf16, #tpu.memory_space<vmem>>, vector<4x286xbf16>
    %c16_62 = arith.constant 16 : index
    %c0_63 = arith.constant 0 : index
    %52 = vector.load %arg9[%c16_62, %c0_63] : memref<36x286xbf16, #tpu.memory_space<vmem>>, vector<4x286xbf16>
    tpu.vector_store %arg9[%c16_62, %c0_63], %51 {strides = array<i32>} : memref<36x286xbf16, #tpu.memory_space<vmem>>, vector<4x286xbf16>,
    %c0_64 = arith.constant 0 : index
    %c20_65 = arith.constant 20 : index
    %53 = vector.load %arg10[%c0_64, %c20_65] : memref<4x324xbf16, #tpu.memory_space<vmem>>, vector<4x286xbf16>
    %c20_66 = arith.constant 20 : index
    %c0_67 = arith.constant 0 : index
    %54 = vector.load %arg9[%c20_66, %c0_67] : memref<36x286xbf16, #tpu.memory_space<vmem>>, vector<4x286xbf16>
    tpu.vector_store %arg9[%c20_66, %c0_67], %53 {strides = array<i32>} : memref<36x286xbf16, #tpu.memory_space<vmem>>, vector<4x286xbf16>,
    %c0_68 = arith.constant 0 : index
    %c36_69 = arith.constant 36 : index
    %55 = vector.load %arg10[%c0_68, %c36_69] : memref<4x324xbf16, #tpu.memory_space<vmem>>, vector<4x286xbf16>
    %c24_70 = arith.constant 24 : index
    %c0_71 = arith.constant 0 : index
    %56 = vector.load %arg9[%c24_70, %c0_71] : memref<36x286xbf16, #tpu.memory_space<vmem>>, vector<4x286xbf16>
    tpu.vector_store %arg9[%c24_70, %c0_71], %55 {strides = array<i32>} : memref<36x286xbf16, #tpu.memory_space<vmem>>, vector<4x286xbf16>,
    %c0_72 = arith.constant 0 : index
    %c37_73 = arith.constant 37 : index
    %57 = vector.load %arg10[%c0_72, %c37_73] : memref<4x324xbf16, #tpu.memory_space<vmem>>, vector<4x286xbf16>
    %c28_74 = arith.constant 28 : index
    %c0_75 = arith.constant 0 : index
    %58 = vector.load %arg9[%c28_74, %c0_75] : memref<36x286xbf16, #tpu.memory_space<vmem>>, vector<4x286xbf16>
    tpu.vector_store %arg9[%c28_74, %c0_75], %57 {strides = array<i32>} : memref<36x286xbf16, #tpu.memory_space<vmem>>, vector<4x286xbf16>,
    %c0_76 = arith.constant 0 : index
    %c38_77 = arith.constant 38 : index
    %59 = vector.load %arg10[%c0_76, %c38_77] : memref<4x324xbf16, #tpu.memory_space<vmem>>, vector<4x286xbf16>
    %c32_78 = arith.constant 32 : index
    %c0_79 = arith.constant 0 : index
    %60 = vector.load %arg9[%c32_78, %c0_79] : memref<36x286xbf16, #tpu.memory_space<vmem>>, vector<4x286xbf16>
    tpu.vector_store %arg9[%c32_78, %c0_79], %59 {strides = array<i32>} : memref<36x286xbf16, #tpu.memory_space<vmem>>, vector<4x286xbf16>,
    %c0_80 = arith.constant 0 : index
    %c0_81 = arith.constant 0 : index
    %61 = vector.load %arg4[%c0_80, %c0_81] : memref<4x36xbf16, #tpu.memory_space<vmem>>, vector<4x36xbf16>
    %c0_82 = arith.constant 0 : index
    %c0_83 = arith.constant 0 : index
    %62 = vector.load %arg9[%c0_82, %c0_83] : memref<36x286xbf16, #tpu.memory_space<vmem>>, vector<36x286xbf16>
    %cst_84 = arith.constant dense<0.000000e+00> : vector<4x286xf32>
    %63 = tpu.matmul %61, %62, %cst_84 {dimension_numbers = #tpu.dot_dimension_numbers<[1], [0], [0], [1], [0, 0, 1, 1], [], []>} : vector<4x36xbf16>, vector<36x286xbf16>, vector<4x286xf32> -> vector<4x286xf32>
    %c0_85 = arith.constant 0 : index
    %c0_86 = arith.constant 0 : index
    %64 = vector.load %arg5[%c0_85, %c0_86] : memref<4x1xf32, #tpu.memory_space<vmem>>, vector<4x1xf32>
    %65 = vector.broadcast %64 : vector<4x1xf32> to vector<4x286xf32>
    %66 = arith.addf %63, %65 : vector<4x286xf32>
    %cst_87 = arith.constant 0.000000e+00 : f32
    %67 = vector.broadcast %cst_87 : f32 to vector<4x286xf32>
    %68 = arith.maximumf %66, %67 : vector<4x286xf32>
    %69 = arith.truncf %68 : vector<4x286xf32> to vector<4x286xbf16>
    %c0_88 = arith.constant 0 : index
    %c0_89 = arith.constant 0 : index
    %70 = vector.load %arg6[%c0_88, %c0_89] : memref<286x1024xbf16, #tpu.memory_space<vmem>>, vector<286x1024xbf16>
    %cst_90 = arith.constant dense<0.000000e+00> : vector<4x1024xf32>
    %71 = tpu.matmul %69, %70, %cst_90 {dimension_numbers = #tpu.dot_dimension_numbers<[1], [0], [0], [1], [0, 0, 1, 1], [], []>} : vector<4x286xbf16>, vector<286x1024xbf16>, vector<4x1024xf32> -> vector<4x1024xf32>
    %cst_91 = arith.constant 0.000000e+00 : f32
    %72 = vector.broadcast %cst_91 : f32 to vector<4x1024xf32>
    %73 = arith.maximumf %71, %72 : vector<4x1024xf32>
    %c0_92 = arith.constant 0 : index
    %c0_93 = arith.constant 0 : index
    %c0_94 = arith.constant 0 : index
    %74 = vector.load %arg8[%c0_92, %c0_93, %c0_94] : memref<1x4x1024xf32, #tpu.memory_space<vmem>>, vector<1x4x1024xf32>
    %75 = vector.shape_cast %74 : vector<1x4x1024xf32> to vector<4x1024xf32>
    %76 = vector.shape_cast %73 : vector<4x1024xf32> to vector<1x4x1024xf32>
    tpu.vector_store %arg8[%c0_92, %c0_93, %c0_94], %76 {strides = array<i32>} : memref<1x4x1024xf32, #tpu.memory_space<vmem>>, vector<1x4x1024xf32>,
    return
  }
  func.func @transform_0(%arg0: i32) -> (i32, i32, i32) {
    %c0_i32 = arith.constant 0 : i32
    %c0_i32_0 = arith.constant 0 : i32
    %c0_i32_1 = arith.constant 0 : i32
    return %arg0, %c0_i32, %c0_i32_0 : i32, i32, i32
  }
  func.func @transform_1(%arg0: i32) -> (i32, i32) {
    %c0_i32 = arith.constant 0 : i32
    %c0_i32_0 = arith.constant 0 : i32
    %c0_i32_1 = arith.constant 0 : i32
    return %c0_i32, %c0_i32_0 : i32, i32
  }
  func.func @transform_2(%arg0: i32) -> (i32, i32) {
    %c0_i32 = arith.constant 0 : i32
    %c0_i32_0 = arith.constant 0 : i32
    %c0_i32_1 = arith.constant 0 : i32
    return %c0_i32, %c0_i32_0 : i32, i32
  }
  func.func @transform_3(%arg0: i32) -> (i32, i32) {
    %c0_i32 = arith.constant 0 : i32
    %c0_i32_0 = arith.constant 0 : i32
    %c0_i32_1 = arith.constant 0 : i32
    return %c0_i32, %c0_i32_0 : i32, i32
  }
  func.func @transform_4(%arg0: i32) -> (i32, i32) {
    %c0_i32 = arith.constant 0 : i32
    %c0_i32_0 = arith.constant 0 : i32
    %c0_i32_1 = arith.constant 0 : i32
    return %c0_i32, %c0_i32_0 : i32, i32
  }
  func.func @transform_5(%arg0: i32) -> (i32, i32) {
    %c0_i32 = arith.constant 0 : i32
    %c0_i32_0 = arith.constant 0 : i32
    %c0_i32_1 = arith.constant 0 : i32
    return %c0_i32, %c0_i32_0 : i32, i32
  }
  func.func @transform_6(%arg0: i32) -> (i32, i32) {
    %c0_i32 = arith.constant 0 : i32
    %c0_i32_0 = arith.constant 0 : i32
    %c0_i32_1 = arith.constant 0 : i32
    return %c0_i32, %c0_i32_0 : i32, i32
  }
  func.func @transform_7(%arg0: i32) -> (i32, i32, i32) {
    %c0_i32 = arith.constant 0 : i32
    %c0_i32_0 = arith.constant 0 : i32
    %c0_i32_1 = arith.constant 0 : i32
    return %arg0, %c0_i32, %c0_i32_0 : i32, i32, i32
  }
}

</mosaic_0001>

<llo_original>
// kernel: tpu_custom_call.1
$region0: #{tpu_custom_call.1}
  #allocation0 [shape = 'u32[]', space=smem, size = 0x4, offset = 0x4, fixed_abs, tag = 'smem constant byte address 0x4 - core index']
  #allocation1 [shape = 'u32[144,128]{1,0:T(1,128)}', space=vmem, size = 0x12000, scoped, tag = 'internal scratch']
  #allocation2 [shape = 'bf16[36,286]{1,0:T(8,128)(2,1)}', space=vmem, size = 0x7800, scoped, tag = 'scratch operand']
  #allocation3 [shape = 'bf16[4,324]{1,0:T(4,128)(2,1)}', space=vmem, size = 0xc00, scoped, tag = 'scratch operand']
  %s0 = inlined_call_operand.hbm [shape: bf16[2,4,324], index: 0, kind: input, shape index: {}]
  %s1 = inlined_call_operand.vmem [shape: bf16[4,36], index: 1, kind: input, shape index: {}]
  %s2 = inlined_call_operand.vmem [shape: f32[4,1], index: 2, kind: input, shape index: {}]
  %s3 = inlined_call_operand.vmem [shape: bf16[4,36], index: 3, kind: input, shape index: {}]
  %s4 = inlined_call_operand.vmem [shape: f32[4,1], index: 4, kind: input, shape index: {}]
  %s5 = inlined_call_operand.hbm [shape: bf16[286,1024], index: 5, kind: input, shape index: {}]
  %s6 = inlined_call_operand.vmem [shape: f32[1,286], index: 6, kind: input, shape index: {}]
  %s7 = inlined_call_operand.hbm [shape: f32[2,4,1024], index: 7, kind: output, shape index: {}]
  %s8 = sld [smem:[#allocation0]]
  $region69: #{tpu_custom_call.1} parent=0
    _
  %s10 = ssub.s32 1, %s8
  %s11 = scalar_select 0, %s10, %s8
  $region1: #{tpu_custom_call.1} parent=0
    #allocation4 [shape = 'u8[6144]{0}', space=vmem, size = 0x1800, scoped, tag = 'input window, operand 0']
    #allocation5 [shape = 's32[2]{0}', space=sflag, size = 0x8, scoped, tag = 'scoped memory for tpu_custom_call.1']
    #allocation6 [shape = 's32[2]{0}', space=sflag, size = 0x8, scoped, tag = 'scoped memory for tpu_custom_call.1']
    #allocation7 [shape = 'u8[589824]{0}', space=vmem, size = 0x90000, scoped, tag = 'input window, operand 5, single buffered']
    #allocation8 [shape = 's32[1]{0}', space=sflag, size = 0x4, scoped, tag = 'scoped memory for tpu_custom_call.1']
    #allocation9 [shape = 'u8[32768]{0}', space=vmem, size = 0x8000, scoped, tag = 'output window, operand 0']
    %12 = vsyncpa [#allocation5], 0
    %s13 = scalar_lea.sflag [#allocation5], 1
    %14 = vsyncpa %s13, 0
    %15 = vsyncpa [#allocation8], 0
    %16 = vsyncpa [#allocation6], 0
    %s17 = scalar_lea.sflag [#allocation6], 1
    %18 = vsyncpa %s17, 0
    loop: start=0, step=1, limit=4
    $region2: #{tpu_custom_call.1} parent=1 // loop_pre_header
      _
    $region3: #{tpu_custom_call.1} parent=1 // loop_header
      %s20 = sphi 0, %s24
      %p21 = scmp.ge.s32.totalorder %s20, 4
      %s30 = sphi 0, %s32
      %s33 = sphi 0, %s30
      %s34 = sphi 0, %s33
      %s50 = sphi 0, %s34
      %s54 = sphi 0, %s54
      %s56 = sphi 0, %s54
      %s57 = sphi 0, %s56
      %s71 = sphi 0, %s57
      %s75 = sphi 0, %s75
      %s77 = sphi 0, %s75
      %s78 = sphi 0, %s77
      %s92 = sphi 0, %s78
      %s96 = sphi 0, %s96
      %s98 = sphi 0, %s96
      %s99 = sphi 0, %s98
      %s113 = sphi 0, %s99
      %s117 = sphi 0, %s117
      %s119 = sphi 0, %s117
      %s120 = sphi 0, %s119
      %s134 = sphi 0, %s120
      %s138 = sphi 0, %s138
      %s140 = sphi 0, %s138
      %s141 = sphi 0, %s140
      %s155 = sphi 0, %s141
      %s159 = sphi 0, %s159
      %s161 = sphi 0, %s159
      %s162 = sphi 0, %s161
      %s176 = sphi 0, %s162
      %s182 = sphi 0, %s184
      %s185 = sphi 0, %s182
      %s186 = sphi 0, %s185
      %s202 = sphi 0, %s186
    $region4: #{tpu_custom_call.1} parent=1 // loop_header_branch
      %23 = sbr.rel (%p21) target = $region8
    $region5: #{tpu_custom_call.1} parent=1 // loop_body
      %s25 = ssub.s32 %s20, 1
      %s26 = ssub.s32 %s20, 2
      %s27 = sadd.s32 %s20, 1
      %s28 = ssub.s32 %s20, %s27
      %p29 = scmp.eq.s32.totalorder %s28, 0
      %s31 = sadd.s32 %s30, 1
      %s32 = scalar_select %p29, %s30, %s31
      %p35 = pneg %p29
      %p36 = scmp.eq.s32.totalorder %s20, 1
      %p37 = por %p35, %p36
      %p38 = scmp.ne.s32.totalorder %s30, %s33
      %p39 = scmp.eq.s32.totalorder %s20, 0
      %p40 = por %p38, %p39
      %p41 = scmp.ne.s32.totalorder %s30, %s33
      %p42 = scmp.eq.s32.totalorder %s25, 1
      %p43 = por %p41, %p42
      %p44 = scmp.ne.s32.totalorder %s33, %s34
      %p45 = scmp.eq.s32.totalorder %s25, 0
      %p46 = por %p44, %p45
      %p47 = scmp.ne.s32.totalorder %s33, %s34
      %p48 = scmp.eq.s32.totalorder %s26, 1
      %p49 = por %p47, %p48
      %p51 = scmp.ne.s32.totalorder %s34, %s50
      %p52 = scmp.eq.s32.totalorder %s26, 0
      %p53 = por %p51, %p52
      %s55 = sadd.s32 %s54, 1
      %p58 = scmp.eq.s32.totalorder %s20, 1
      %p59 = scmp.ne.s32.totalorder %s54, %s56
      %p60 = scmp.eq.s32.totalorder %s20, 0
      %p61 = por %p59, %p60
      %p62 = scmp.ne.s32.totalorder %s54, %s56
      %p63 = scmp.eq.s32.totalorder %s25, 1
      %p64 = por %p62, %p63
      %p65 = scmp.ne.s32.totalorder %s56, %s57
      %p66 = scmp.eq.s32.totalorder %s25, 0
      %p67 = por %p65, %p66
      %p68 = scmp.ne.s32.totalorder %s56, %s57
      %p69 = scmp.eq.s32.totalorder %s26, 1
      %p70 = por %p68, %p69
      %p72 = scmp.ne.s32.totalorder %s57, %s71
      %p73 = scmp.eq.s32.totalorder %s26, 0
      %p74 = por %p72, %p73
      %s76 = sadd.s32 %s75, 1
      %p79 = scmp.eq.s32.totalorder %s20, 1
      %p80 = scmp.ne.s32.totalorder %s75, %s77
      %p81 = scmp.eq.s32.totalorder %s20, 0
      %p82 = por %p80, %p81
      %p83 = scmp.ne.s32.totalorder %s75, %s77
      %p84 = scmp.eq.s32.totalorder %s25, 1
      %p85 = por %p83, %p84
      %p86 = scmp.ne.s32.totalorder %s77, %s78
      %p87 = scmp.eq.s32.totalorder %s25, 0
      %p88 = por %p86, %p87
      %p89 = scmp.ne.s32.totalorder %s77, %s78
      %p90 = scmp.eq.s32.totalorder %s26, 1
      %p91 = por %p89, %p90
      %p93 = scmp.ne.s32.totalorder %s78, %s92
      %p94 = scmp.eq.s32.totalorder %s26, 0
      %p95 = por %p93, %p94
      %s97 = sadd.s32 %s96, 1
      %p100 = scmp.eq.s32.totalorder %s20, 1
      %p101 = scmp.ne.s32.totalorder %s96, %s98
      %p102 = scmp.eq.s32.totalorder %s20, 0
      %p103 = por %p101, %p102
      %p104 = scmp.ne.s32.totalorder %s96, %s98
      %p105 = scmp.eq.s32.totalorder %s25, 1
      %p106 = por %p104, %p105
      %p107 = scmp.ne.s32.totalorder %s98, %s99
      %p108 = scmp.eq.s32.totalorder %s25, 0
      %p109 = por %p107, %p108
      %p110 = scmp.ne.s32.totalorder %s98, %s99
      %p111 = scmp.eq.s32.totalorder %s26, 1
      %p112 = por %p110, %p111
      %p114 = scmp.ne.s32.totalorder %s99, %s113
      %p115 = scmp.eq.s32.totalorder %s26, 0
      %p116 = por %p114, %p115
      %s118 = sadd.s32 %s117, 1
      %p121 = scmp.eq.s32.totalorder %s20, 1
      %p122 = scmp.ne.s32.totalorder %s117, %s119
      %p123 = scmp.eq.s32.totalorder %s20, 0
      %p124 = por %p122, %p123
      %p125 = scmp.ne.s32.totalorder %s117, %s119
      %p126 = scmp.eq.s32.totalorder %s25, 1
      %p127 = por %p125, %p126
      %p128 = scmp.ne.s32.totalorder %s119, %s120
      %p129 = scmp.eq.s32.totalorder %s25, 0
      %p130 = por %p128, %p129
      %p131 = scmp.ne.s32.totalorder %s119, %s120
      %p132 = scmp.eq.s32.totalorder %s26, 1
      %p133 = por %p131, %p132
      %p135 = scmp.ne.s32.totalorder %s120, %s134
      %p136 = scmp.eq.s32.totalorder %s26, 0
      %p137 = por %p135, %p136
      %s139 = sadd.s32 %s138, 1
      %p142 = scmp.eq.s32.totalorder %s20, 1
      %p143 = scmp.ne.s32.totalorder %s138, %s140
      %p144 = scmp.eq.s32.totalorder %s20, 0
      %p145 = por %p143, %p144
      %p146 = scmp.ne.s32.totalorder %s138, %s140
      %p147 = scmp.eq.s32.totalorder %s25, 1
      %p148 = por %p146, %p147
      %p149 = scmp.ne.s32.totalorder %s140, %s141
      %p150 = scmp.eq.s32.totalorder %s25, 0
      %p151 = por %p149, %p150
      %p152 = scmp.ne.s32.totalorder %s140, %s141
      %p153 = scmp.eq.s32.totalorder %s26, 1
      %p154 = por %p152, %p153
      %p156 = scmp.ne.s32.totalorder %s141, %s155
      %p157 = scmp.eq.s32.totalorder %s26, 0
      %p158 = por %p156, %p157
      %s160 = sadd.s32 %s159, 1
      %p163 = scmp.eq.s32.totalorder %s20, 1
      %p164 = scmp.ne.s32.totalorder %s159, %s161
      %p165 = scmp.eq.s32.totalorder %s20, 0
      %p166 = por %p164, %p165
      %p167 = scmp.ne.s32.totalorder %s159, %s161
      %p168 = scmp.eq.s32.totalorder %s25, 1
      %p169 = por %p167, %p168
      %p170 = scmp.ne.s32.totalorder %s161, %s162
      %p171 = scmp.eq.s32.totalorder %s25, 0
      %p172 = por %p170, %p171
      %p173 = scmp.ne.s32.totalorder %s161, %s162
      %p174 = scmp.eq.s32.totalorder %s26, 1
      %p175 = por %p173, %p174
      %p177 = scmp.ne.s32.totalorder %s162, %s176
      %p178 = scmp.eq.s32.totalorder %s26, 0
      %p179 = por %p177, %p178
      %s180 = ssub.s32 %s20, %s27
      %p181 = scmp.eq.s32.totalorder %s180, 0
      %s183 = sadd.s32 %s182, 1
      %s184 = scalar_select %p181, %s182, %s183
      %p187 = pneg %p181
      %p188 = scmp.eq.s32.totalorder %s20, 1
      %p189 = por %p187, %p188
      %p190 = scmp.ne.s32.totalorder %s182, %s185
      %p191 = scmp.eq.s32.totalorder %s20, 0
      %p192 = por %p190, %p191
      %p193 = scmp.ne.s32.totalorder %s182, %s185
      %p194 = scmp.eq.s32.totalorder %s25, 1
      %p195 = por %p193, %p194
      %p196 = scmp.ne.s32.totalorder %s185, %s186
      %p197 = scmp.eq.s32.totalorder %s25, 0
      %p198 = por %p196, %p197
      %p199 = scmp.ne.s32.totalorder %s185, %s186
      %p200 = scmp.eq.s32.totalorder %s26, 1
      %p201 = por %p199, %p200
      %p203 = scmp.ne.s32.totalorder %s186, %s202
      %p204 = scmp.eq.s32.totalorder %s26, 0
      %p205 = por %p203, %p204
      %p206 = scmp.le.s32.totalorder 1, %s20
      %p207 = scmp.lt.s32.totalorder %s20, 3
      %p208 = pnand %p206, %p207
      %p209 = pneg %p208
      // Predicated region
      $region9: #{tpu_custom_call.1} parent=5 // pred_check
        _
      $region10: #{tpu_custom_call.1} parent=5 // pred_check_branch
        %211 = sbr.rel (%p208) target = $region12
      $region11: #{tpu_custom_call.1} parent=5 // pred_region
        %s212 = ssub.s32 %s20, 1
        // Predicated region
        $region13: #{tpu_custom_call.1} parent=11 // pred_check
          %p213 = pneg %p67
        $region14: #{tpu_custom_call.1} parent=11 // pred_check_branch
          %215 = sbr.rel (%p213) target = $region16
        $region15: #{tpu_custom_call.1} parent=11 // pred_region
          _
        $region16: #{tpu_custom_call.1} parent=11 // pred_fallthru
          _
        // Predicated region
        $region17: #{tpu_custom_call.1} parent=11 // pred_check
          %p216 = pneg %p88
        $region18: #{tpu_custom_call.1} parent=11 // pred_check_branch
          %218 = sbr.rel (%p216) target = $region20
        $region19: #{tpu_custom_call.1} parent=11 // pred_region
          _
        $region20: #{tpu_custom_call.1} parent=11 // pred_fallthru
          _
        // Predicated region
        $region21: #{tpu_custom_call.1} parent=11 // pred_check
          %p219 = pneg %p109
        $region22: #{tpu_custom_call.1} parent=11 // pred_check_branch
          %221 = sbr.rel (%p219) target = $region24
        $region23: #{tpu_custom_call.1} parent=11 // pred_region
          _
        $region24: #{tpu_custom_call.1} parent=11 // pred_fallthru
          _
        // Predicated region
        $region25: #{tpu_custom_call.1} parent=11 // pred_check
          %p222 = pneg %p130
        $region26: #{tpu_custom_call.1} parent=11 // pred_check_branch
          %224 = sbr.rel (%p222) target = $region28
        $region27: #{tpu_custom_call.1} parent=11 // pred_region
          _
        $region28: #{tpu_custom_call.1} parent=11 // pred_fallthru
          _
        // Predicated region
        $region29: #{tpu_custom_call.1} parent=11 // pred_check
          %p225 = pneg %p151
        $region30: #{tpu_custom_call.1} parent=11 // pred_check_branch
          %227 = sbr.rel (%p225) target = $region32
        $region31: #{tpu_custom_call.1} parent=11 // pred_region
          %s229 = ssub.s32 18432, 18432
          %230 = vsyncadd [#allocation8], %s229
          %s231 = sshll.u32 [#allocation7], 4
          %s232 = int_to_ptr.vmem [resolvable:$true] %s231
          %237 = dma.hbm_to_vmem [thread:$0]  %s5, 18432, %s232, [#allocation8], 512, 512, 32
        $region32: #{tpu_custom_call.1} parent=11 // pred_fallthru
          _
        // Predicated region
        $region33: #{tpu_custom_call.1} parent=11 // pred_check
          %p238 = pneg %p172
        $region34: #{tpu_custom_call.1} parent=11 // pred_check_branch
          %240 = sbr.rel (%p238) target = $region36
        $region35: #{tpu_custom_call.1} parent=11 // pred_region
          _
        $region36: #{tpu_custom_call.1} parent=11 // pred_fallthru
          _
      $region12: #{tpu_custom_call.1} parent=5 // pred_fallthru
        _
      %p241 = scmp.lt.s32.totalorder %s20, 2
      // Predicated region
      $region37: #{tpu_custom_call.1} parent=5 // pred_check
        %p242 = pneg %p241
      $region38: #{tpu_custom_call.1} parent=5 // pred_check_branch
        %244 = sbr.rel (%p242) target = $region40
      $region39: #{tpu_custom_call.1} parent=5 // pred_region
        // Predicated region
        $region41: #{tpu_custom_call.1} parent=39 // pred_check
          %p245 = pneg %p40
        $region42: #{tpu_custom_call.1} parent=39 // pred_check_branch
          %247 = sbr.rel (%p245) target = $region44
        $region43: #{tpu_custom_call.1} parent=39 // pred_region
          %s248 = sand.u32 %s30, 1
          %s249 = scalar_lea.sflag [#allocation5], %s248
          %s250 = sand.u32 %s30, 1
          %s251 = smul.addr %s250, 6
          %s252 = scalar_lea.vmem [#allocation4], %s251
          %s254 = ssub.s32 96, 96
          %255 = vsyncadd %s249, %s254
          %s256 = smul.addr %s20, 3
          %s257 = smul.addr %s256, 32
          %s258 = scalar_lea.hbm %s0, %s257
          %s260 = sshll.u32 %s252, 4
          %s261 = int_to_ptr.vmem [resolvable:$true] %s260
          %263 = dma.hbm_to_vmem [thread:$0]  %s258, 96, %s261, %s249
        $region44: #{tpu_custom_call.1} parent=39 // pred_fallthru
          _
      $region40: #{tpu_custom_call.1} parent=5 // pred_fallthru
        _
      %p264 = scmp.le.s32.totalorder 1, %s20
      %p265 = scmp.lt.s32.totalorder %s20, 3
      %p266 = pnand %p264, %p265
      %p267 = pneg %p266
      // Predicated region
      $region45: #{tpu_custom_call.1} parent=5 // pred_check
        _
      $region46: #{tpu_custom_call.1} parent=5 // pred_check_branch
        %269 = sbr.rel (%p266) target = $region48
      $region47: #{tpu_custom_call.1} parent=5 // pred_region
        %s270 = ssub.s32 %s20, 1
        %s271 = sand.u32 %s33, 1
        %s272 = scalar_lea.sflag [#allocation5], %s271
        %s273 = sand.u32 %s33, 1
        %s274 = smul.addr %s273, 6
        %s275 = scalar_lea.vmem [#allocation4], %s274
        // Predicated region
        $region49: #{tpu_custom_call.1} parent=47 // pred_check
          %p276 = pneg %p46
        $region50: #{tpu_custom_call.1} parent=47 // pred_check_branch
          %278 = sbr.rel (%p276) target = $region52
        $region51: #{tpu_custom_call.1} parent=47 // pred_region
          %279 = dma.done %s272, 96
        $region52: #{tpu_custom_call.1} parent=47 // pred_fallthru
          _
        // Predicated region
        $region53: #{tpu_custom_call.1} parent=47 // pred_check
          %p280 = pneg %p151
        $region54: #{tpu_custom_call.1} parent=47 // pred_check_branch
          %282 = sbr.rel (%p280) target = $region56
        $region55: #{tpu_custom_call.1} parent=47 // pred_region
          %283 = dma.done [#allocation8], 18432
        $region56: #{tpu_custom_call.1} parent=47 // pred_fallthru
          _
        %s284 = sand.u32 %s33, 1
        %s285 = scalar_lea.sflag [#allocation5], %s284
        %s286 = sand.u32 %s33, 1
        %s287 = smul.addr %s286, 6
        %s288 = scalar_lea.vmem [#allocation4], %s287
        %p289 = pneg %p46
        %p290 = pneg %p43
        %p291 = pneg %p67
        %p292 = pneg %p64
        %p293 = pneg %p88
        %p294 = pneg %p85
        %p295 = pneg %p109
        %p296 = pneg %p106
        %p297 = pneg %p130
        %p298 = pneg %p127
        %p299 = pneg %p151
        %p300 = pneg %p148
        %p301 = pneg %p172
        %p302 = pneg %p169
        %p303 = pneg %p198
        %p304 = pneg %p195
        %s305 = sand.u32 %s185, 1
        %s306 = scalar_lea.sflag [#allocation6], %s305
        %s307 = sand.u32 %s185, 1
        %s308 = smul.addr %s307, 32
        %s309 = scalar_lea.vmem [#allocation9], %s308
        %v311 = vld [vmem:[%s275] sm:$0x3f]
        %v313 = vcombine.high %v311, %v311
        %v315 = vunpack.c.l.s4 1983009808
        %v316 = vunpack.c.0.s8 %v315
        %v317 = vlaneseq
        %v318 = vshrl.u32 %v317, 7
        %v319 = vsub.s32 %v316, %v318
        %v320 = vrot.slane %v311, %v319
        %v322 = vunpack.c.l.s4 1983009808
        %v323 = vunpack.c.0.s8 %v322
        %v324 = vlaneseq
        %v325 = vshrl.u32 %v324, 7
        %v326 = vsub.s32 %v323, %v325
        %v327 = vrot.slane %v313, %v326
        %330 = vst [vmem:[#allocation2] sm:$0x33] %v320
        %vm331 = vcmask 238592
        %332 = vst.msk [vmem:[#allocation2 + $0x8] sm:$0x3] %vm331, %v327
        %v333 = vld [vmem:[%s275] sm:$0x3f]
        %v335 = vcombine.low %v333, %v333
        %v337 = vunpack.c.l.s4 1983009808
        %v338 = vunpack.c.0.s8 %v337
        %v339 = vlaneseq
        %v340 = vshrl.u32 %v339, 7
        %v341 = vsub.s32 %v338, %v340
        %v342 = vrot.slane %v335, %v341
        %v344 = vunpack.c.l.s4 1983009808
        %v345 = vunpack.c.0.s8 %v344
        %v346 = vlaneseq
        %v347 = vshrl.u32 %v346, 7
        %v348 = vsub.s32 %v345, %v347
        %v349 = vrot.slane %v333, %v348
        %350 = vrot.lane.b32.xlu0 %v342, 127
        %v351 = vpop.permute.xlu0 %350
        %352 = vrot.lane.b32.xlu0 %v349, 127
        %v353 = vpop.permute.xlu0 %352
        %v354 = vrot.slane %v351, 4
        %v355 = vrot.slane %v353, 4
        %vm356 = vcmask 1043456
        %v357 = vsel %vm356, %v354, %v355
        %vm358 = vcmask 1039360
        %v359 = vsel %vm358, %v351, %v357
        %362 = vst [vmem:[#allocation2] sm:$0xcc] %v359
        %vm363 = vcmask 240642
        %364 = vst.msk [vmem:[#allocation2 + $0x8] sm:$0xc] %vm363, %v353
        %v365 = vld [vmem:[%s275] sm:$0x3f]
        %v367 = vcombine.high %v365, %v365
        %v369 = vunpack.c.l.s4 1983009808
        %v370 = vunpack.c.0.s8 %v369
        %v371 = vlaneseq
        %v372 = vshrl.u32 %v371, 7
        %v373 = vsub.s32 %v370, %v372
        %v374 = vrot.slane %v365, %v373
        %v376 = vunpack.c.l.s4 1983009808
        %v377 = vunpack.c.0.s8 %v376
        %v378 = vlaneseq
        %v379 = vshrl.u32 %v378, 7
        %v380 = vsub.s32 %v377, %v379
        %v381 = vrot.slane %v367, %v380
        %382 = vrot.lane.b32.xlu0 %v374, 126
        %v383 = vpop.permute.xlu0 %382
        %384 = vrot.lane.b32.xlu0 %v381, 126
        %v385 = vpop.permute.xlu0 %384
        %v386 = vrot.slane %v383, 4
        %v387 = vrot.slane %v385, 4
        %v388 = vsel %vm356, %v386, %v387
        %vm389 = vcmask 1031168
        %v390 = vsel %vm389, %v383, %v388
        %393 = vst [vmem:[#allocation2 + $0xc] sm:$0x33] %v390
        %394 = vst.msk [vmem:[#allocation2 + $0x14] sm:$0x3] %vm331, %v385
        %v395 = vld [vmem:[%s275] sm:$0x3f]
        %v397 = vcombine.low %v395, %v395
        %v399 = vunpack.c.l.s4 1983009808
        %v400 = vunpack.c.0.s8 %v399
        %v401 = vlaneseq
        %v402 = vshrl.u32 %v401, 7
        %v403 = vsub.s32 %v400, %v402
        %v404 = vrot.slane %v397, %v403
        %v406 = vunpack.c.l.s4 1983009808
        %v407 = vunpack.c.0.s8 %v406
        %v408 = vlaneseq
        %v409 = vshrl.u32 %v408, 7
        %v410 = vsub.s32 %v407, %v409
        %v411 = vrot.slane %v395, %v410
        %412 = vrot.lane.b32.xlu0 %v404, 110
        %v413 = vpop.permute.xlu0 %412
        %414 = vrot.lane.b32.xlu0 %v411, 110
        %v415 = vpop.permute.xlu0 %414
        %v416 = vrot.slane %v413, 4
        %v417 = vrot.slane %v415, 4
        %v418 = vsel %vm356, %v416, %v417
        %vm419 = vcmask 900096
        %v420 = vsel %vm419, %v413, %v418
        %423 = vst [vmem:[#allocation2 + $0xc] sm:$0xcc] %v420
        %424 = vst.msk [vmem:[#allocation2 + $0x14] sm:$0xc] %vm363, %v415
        %v425 = vld [vmem:[%s275] sm:$0x3f]
        %v427 = vcombine.high %v425, %v425
        %v429 = vunpack.c.l.s4 1983009808
        %v430 = vunpack.c.0.s8 %v429
        %v431 = vlaneseq
        %v432 = vshrl.u32 %v431, 7
        %v433 = vsub.s32 %v430, %v432
        %v434 = vrot.slane %v425, %v433
        %v436 = vunpack.c.l.s4 1983009808
        %v437 = vunpack.c.0.s8 %v436
        %v438 = vlaneseq
        %v439 = vshrl.u32 %v438, 7
        %v440 = vsub.s32 %v437, %v439
        %v441 = vrot.slane %v427, %v440
        %442 = vrot.lane.b32.xlu0 %v434, 109
        %v443 = vpop.permute.xlu0 %442
        %444 = vrot.lane.b32.xlu0 %v441, 109
        %v445 = vpop.permute.xlu0 %444
        %v446 = vrot.slane %v443, 4
        %v447 = vrot.slane %v445, 4
        %v448 = vsel %vm356, %v446, %v447
        %vm449 = vcmask 891904
        %v450 = vsel %vm449, %v443, %v448
        %453 = vst [vmem:[#allocation2 + $0x18] sm:$0x33] %v450
        %454 = vst.msk [vmem:[#allocation2 + $0x20] sm:$0x3] %vm331, %v445
        %v455 = vld [vmem:[%s275] sm:$0x3f]
        %v457 = vcombine.low %v455, %v455
        %v459 = vunpack.c.l.s4 1983009808
        %v460 = vunpack.c.0.s8 %v459
        %v461 = vlaneseq
        %v462 = vshrl.u32 %v461, 7
        %v463 = vsub.s32 %v460, %v462
        %v464 = vrot.slane %v457, %v463
        %v466 = vunpack.c.l.s4 1983009808
        %v467 = vunpack.c.0.s8 %v466
        %v468 = vlaneseq
        %v469 = vshrl.u32 %v468, 7
        %v470 = vsub.s32 %v467, %v469
        %v471 = vrot.slane %v455, %v470
        %472 = vrot.lane.b32.xlu0 %v464, 108
        %v473 = vpop.permute.xlu0 %472
        %474 = vrot.lane.b32.xlu0 %v471, 108
        %v475 = vpop.permute.xlu0 %474
        %v476 = vrot.slane %v473, 4
        %v477 = vrot.slane %v475, 4
        %v478 = vsel %vm356, %v476, %v477
        %vm479 = vcmask 883712
        %v480 = vsel %vm479, %v473, %v478
        %483 = vst [vmem:[#allocation2 + $0x18] sm:$0xcc] %v480
        %484 = vst.msk [vmem:[#allocation2 + $0x20] sm:$0xc] %vm363, %v475
        %v485 = vld [vmem:[%s275] sm:$0x3f]
        %v487 = vcombine.high %v485, %v485
        %v489 = vunpack.c.l.s4 1983009808
        %v490 = vunpack.c.0.s8 %v489
        %v491 = vlaneseq
        %v492 = vshrl.u32 %v491, 7
        %v493 = vsub.s32 %v490, %v492
        %v494 = vrot.slane %v485, %v493
        %v496 = vunpack.c.l.s4 1983009808
        %v497 = vunpack.c.0.s8 %v496
        %v498 = vlaneseq
        %v499 = vshrl.u32 %v498, 7
        %v500 = vsub.s32 %v497, %v499
        %v501 = vrot.slane %v487, %v500
        %502 = vrot.lane.b32.xlu0 %v494, 92
        %v503 = vpop.permute.xlu0 %502
        %504 = vrot.lane.b32.xlu0 %v501, 92
        %v505 = vpop.permute.xlu0 %504
        %v506 = vrot.slane %v503, 4
        %v507 = vrot.slane %v505, 4
        %v508 = vsel %vm356, %v506, %v507
        %vm509 = vcmask 752640
        %v510 = vsel %vm509, %v503, %v508
        %513 = vst [vmem:[#allocation2 + $0x24] sm:$0x33] %v510
        %514 = vst.msk [vmem:[#allocation2 + $0x2c] sm:$0x3] %vm331, %v505
        %v515 = vld [vmem:[%s275] sm:$0x3f]
        %v517 = vcombine.low %v515, %v515
        %v519 = vunpack.c.l.s4 1983009808
        %v520 = vunpack.c.0.s8 %v519
        %v521 = vlaneseq
        %v522 = vshrl.u32 %v521, 7
        %v523 = vsub.s32 %v520, %v522
        %v524 = vrot.slane %v517, %v523
        %v526 = vunpack.c.l.s4 1983009808
        %v527 = vunpack.c.0.s8 %v526
        %v528 = vlaneseq
        %v529 = vshrl.u32 %v528, 7
        %v530 = vsub.s32 %v527, %v529
        %v531 = vrot.slane %v515, %v530
        %532 = vrot.lane.b32.xlu0 %v524, 91
        %v533 = vpop.permute.xlu0 %532
        %534 = vrot.lane.b32.xlu0 %v531, 91
        %v535 = vpop.permute.xlu0 %534
        %v536 = vrot.slane %v533, 4
        %v537 = vrot.slane %v535, 4
        %v538 = vsel %vm356, %v536, %v537
        %vm539 = vcmask 744448
        %v540 = vsel %vm539, %v533, %v538
        %543 = vst [vmem:[#allocation2 + $0x24] sm:$0xcc] %v540
        %544 = vst.msk [vmem:[#allocation2 + $0x2c] sm:$0xc] %vm363, %v535
        %v545 = vld [vmem:[%s275] sm:$0x3f]
        %v547 = vcombine.high %v545, %v545
        %v549 = vunpack.c.l.s4 1983009808
        %v550 = vunpack.c.0.s8 %v549
        %v551 = vlaneseq
        %v552 = vshrl.u32 %v551, 7
        %v553 = vsub.s32 %v550, %v552
        %v554 = vrot.slane %v545, %v553
        %v556 = vunpack.c.l.s4 1983009808
        %v557 = vunpack.c.0.s8 %v556
        %v558 = vlaneseq
        %v559 = vshrl.u32 %v558, 7
        %v560 = vsub.s32 %v557, %v559
        %v561 = vrot.slane %v547, %v560
        %562 = vrot.lane.b32.xlu0 %v554, 90
        %v563 = vpop.permute.xlu0 %562
        %564 = vrot.lane.b32.xlu0 %v561, 90
        %v565 = vpop.permute.xlu0 %564
        %v566 = vrot.slane %v563, 4
        %v567 = vrot.slane %v565, 4
        %v568 = vsel %vm356, %v566, %v567
        %vm569 = vcmask 736256
        %v570 = vsel %vm569, %v563, %v568
        %573 = vst [vmem:[#allocation2 + $0x30] sm:$0x33] %v570
        %574 = vst.msk [vmem:[#allocation2 + $0x38] sm:$0x3] %vm331, %v565
        %v575 = vld [vmem:[%s1] sm:$0x3]
        %v576 = vld [vmem:[#allocation2] sm:$0xff]
        %v577 = vld [vmem:[#allocation2 + $0x8] sm:$0xf]
        %v578 = vld [vmem:[#allocation2 + $0xc] sm:$0xff]
        %v579 = vld [vmem:[#allocation2 + $0x14] sm:$0xf]
        %v580 = vld [vmem:[#allocation2 + $0x18] sm:$0xff]
        %v581 = vld [vmem:[#allocation2 + $0x20] sm:$0xf]
        %v582 = vld [vmem:[#allocation2 + $0x24] sm:$0xff]
        %v583 = vld [vmem:[#allocation2 + $0x2c] sm:$0xf]
        %v584 = vld [vmem:[#allocation2 + $0x30] sm:$0x33]
        %v585 = vld [vmem:[#allocation2 + $0x38] sm:$0x3]
        %v586 = vld [vmem:[%s2] sm:$0xf]
        %588 = vset.pattern.permute.xlu0 0
        %589 = vperm.xlu0 %588, %v586
        %v590 = vpop.permute.xlu0 %589
        %v602 = vunpack.c.l.b16 %v576
        %v603 = vunpack.c.h.b16 %v576
        %v604 = vunpack.c.l.b16 %v577
        %v605 = vunpack.c.l.b16 %v578
        %v606 = vunpack.c.h.b16 %v578
        %v607 = vunpack.c.l.b16 %v579
        %v608 = vunpack.c.l.b16 %v580
        %v609 = vunpack.c.h.b16 %v580
        %v610 = vunpack.c.l.b16 %v581
        %v611 = vunpack.c.l.b16 %v582
        %v612 = vunpack.c.h.b16 %v582
        %v613 = vunpack.c.l.b16 %v583
        %v614 = vunpack.c.l.b16 %v584
        %v615 = vunpack.c.h.b16 %v584
        %v616 = vunpack.c.l.b16 %v585
        %v617 = vpack.c.b16 %v605, %v602
        %v618 = vpack.c.b16 %v606, %v603
        %v619 = vpack.c.b16 %v607, %v604
        %v620 = vpack.c.b16 %v611, %v608
        %v621 = vpack.c.b16 %v612, %v609
        %v622 = vpack.c.b16 %v613, %v610
        %v623 = vpack.c.b16 %v614, %v614
        %v624 = vpack.c.b16 %v615, %v615
        %v625 = vpack.c.b16 %v616, %v616
        %vm632 = vcmask 293888
        %v634 = vsel %vm632, %v575, 0
        %vm636 = vcmask 1041408
        %v638 = vsel %vm636, %v623, 0
        %v641 = vsel %vm636, %v624, 0
        %v644 = vsel %vm636, %v625, 0
        %646 = vmatprep.subr.bf16.mxu0 %v618
        %647 = vmatpush1.bf16.msra.mxu0 %v617
        %648 = vmatprep.subr.bf16.mxu0 %v621
        %649 = vmatpush1.bf16.msra.mxu0 %v620
        %650 = vmatprep.subr.bf16.mxu0 %v641
        %651 = vmatpush1.bf16.msra.mxu0 %v638
        %652 = vmatprep.subr.bf16.mxu0 0
        %653 = vmatpush1.bf16.msra.mxu0 0
        %654 = vmatprep.subr.bf16.mxu0 0
        %655 = vmatpush1.bf16.msra.mxu0 0
        %656 = vmatprep.subr.bf16.mxu0 0
        %657 = vmatpush1.bf16.msra.mxu0 0
        %658 = vmatprep.subr.bf16.mxu0 0
        %659 = vmatpush1.bf16.msra.mxu0 0
        %660 = vmatprep.subr.bf16.mxu0 0
        %661 = vmatpush1.bf16.msra.mxu0 0
        %662 = vmatprep.subr.bf16.mxu0 0
        %663 = vmatpush1.bf16.msra.mxu0 0
        %664 = vmatprep.subr.bf16.mxu0 0
        %665 = vmatpush1.bf16.msra.mxu0 0
        %666 = vmatprep.subr.bf16.mxu0 0
        %667 = vmatpush1.bf16.msra.mxu0 0
        %668 = vmatprep.subr.bf16.mxu0 0
        %669 = vmatpush1.bf16.msra.mxu0 0
        %670 = vmatprep.subr.bf16.mxu0 0
        %671 = vmatpush1.bf16.msra.mxu0 0
        %672 = vmatprep.subr.bf16.mxu0 0
        %673 = vmatpush1.bf16.msra.mxu0 0
        %674 = vmatprep.subr.bf16.mxu0 0
        %675 = vmatpush1.bf16.msra.mxu0 0
        %676 = vmatprep.subr.bf16.mxu0 0
        %677 = vmatpush1.bf16.msra.mxu0 0
        %678 = vmatprep.mubr.bf16.mxu0 0
        %679 = vmatmul.mubr.bf16.gmra.mrb[0].mxu0 %v634
        %v680 = vpop.f32.mrb[0].mxu0
        %v681 = vadd.f32 %v590, %v680
        %v682 = vpop.f32.mrb[0].mxu0
        %v683 = vadd.f32 %v590, %v682
        %v684 = vpop.f32.mrb[0].mxu0
        %v685 = vpop.f32.mrb[0].mxu0
        %686 = vdwg.mxu0
        %687 = vmatprep.subr.bf16.mxu0 0
        %688 = vmatpush1.bf16.msra.mxu0 %v619
        %689 = vmatprep.subr.bf16.mxu0 0
        %690 = vmatpush1.bf16.msra.mxu0 %v622
        %691 = vmatprep.subr.bf16.mxu0 0
        %692 = vmatpush1.bf16.msra.mxu0 %v644
        %693 = vmatprep.subr.bf16.mxu0 0
        %694 = vmatpush1.bf16.msra.mxu0 0
        %695 = vmatprep.subr.bf16.mxu0 0
        %696 = vmatpush1.bf16.msra.mxu0 0
        %697 = vmatprep.subr.bf16.mxu0 0
        %698 = vmatpush1.bf16.msra.mxu0 0
        %699 = vmatprep.subr.bf16.mxu0 0
        %700 = vmatpush1.bf16.msra.mxu0 0
        %701 = vmatprep.subr.bf16.mxu0 0
        %702 = vmatpush1.bf16.msra.mxu0 0
        %703 = vmatprep.subr.bf16.mxu0 0
        %704 = vmatpush1.bf16.msra.mxu0 0
        %705 = vmatprep.subr.bf16.mxu0 0
        %706 = vmatpush1.bf16.msra.mxu0 0
        %707 = vmatprep.subr.bf16.mxu0 0
        %708 = vmatpush1.bf16.msra.mxu0 0
        %709 = vmatprep.subr.bf16.mxu0 0
        %710 = vmatpush1.bf16.msra.mxu0 0
        %711 = vmatprep.subr.bf16.mxu0 0
        %712 = vmatpush1.bf16.msra.mxu0 0
        %713 = vmatprep.subr.bf16.mxu0 0
        %714 = vmatpush1.bf16.msra.mxu0 0
        %715 = vmatprep.subr.bf16.mxu0 0
        %716 = vmatpush1.bf16.msra.mxu0 0
        %717 = vmatprep.subr.bf16.mxu0 0
        %718 = vmatpush1.bf16.msra.mxu0 0
        %719 = vmatprep.mubr.bf16.mxu0 0
        %720 = vmatmul.mubr.bf16.gmra.mrb[0].mxu0 %v634
        %v721 = vpop.f32.mrb[0].mxu0
        %v722 = vadd.f32 %v590, %v721
        %v723 = vpop.f32.mrb[0].mxu0
        %v724 = vpop.f32.mrb[0].mxu0
        %v725 = vpop.f32.mrb[0].mxu0
        %726 = vdwg.mxu0
        %v727 = vmax.f32 %v681, 0.0
        %v728 = vmax.f32 %v683, 0.0
        %v729 = vmax.f32 %v722, 0.0
        %vm730 = vcmask 148480
        %731 = vst.msk [vmem:[#allocation3] sm:$0x3] %vm730, 0
        %vm732 = vcmask 550280
        %733 = vst.msk [vmem:[#allocation3 + $0x4] sm:$0x3] %vm732, 0
        %v734 = vld [vmem:[%s6] sm:$0x7]
        %v736 = vlaneseq
        %v737 = vshrl.u32 %v736, 7
        %v738 = vsub.s32 0, %v737
        %v739 = vrot.slane %v734, %v738
        %v740 = vlaneseq
        %v741 = vshrl.u32 %v740, 7
        %v742 = vsub.s32 1, %v741
        %v743 = vrot.slane %v734, %v742
        %v744 = vlaneseq
        %v745 = vshrl.u32 %v744, 7
        %v746 = vsub.s32 2, %v745
        %v747 = vrot.slane %v734, %v746
        %v751 = vmul.f32 %v727, %v739
        %v752 = vmul.f32 %v728, %v743
        %v753 = vmul.f32 %v729, %v747
        %v754 = vpack.c.bf16 %v751, %v751
        %v755 = vpack.c.bf16 %v752, %v752
        %v756 = vpack.c.bf16 %v753, %v753
        %v760 = vcombine.low %v754, %v755
        %v762 = vunpack.c.l.s4 1983009808
        %v763 = vunpack.c.0.s8 %v762
        %v764 = vlaneseq
        %v765 = vshrl.u32 %v764, 7
        %v766 = vsub.s32 %v763, %v765
        %v767 = vrot.slane %v760, %v766
        %v769 = vunpack.c.l.s4 1983009808
        %v770 = vunpack.c.0.s8 %v769
        %v771 = vlaneseq
        %v772 = vshrl.u32 %v771, 7
        %v773 = vsub.s32 %v770, %v772
        %v774 = vrot.slane %v756, %v773
        %v775 = vcombine.low %v767, %v774
        %776 = vrot.lane.b32.xlu0 %v775, 19
        %v777 = vpop.permute.xlu0 %776
        %v778 = vrot.slane %v777, 6
        %vm779 = vcmask 154624
        %v780 = vsel %vm779, %v778, %v777
        %vm782 = vcmask 1041560
        %vm783 = vcmask 1043458
        %vm784 = vmor %vm783, %vm782
        %vm785 = vcmask 398340
        %vm786 = vmor %vm785, %vm784
        %787 = vst.msk [vmem:[#allocation3] sm:$0x3f] %vm786, %v780
        %v788 = vld [vmem:[#allocation3] sm:$0x3f]
        %v790 = vcombine.high %v788, %v788
        %v792 = vunpack.c.l.s4 1983009808
        %v793 = vunpack.c.0.s8 %v792
        %v794 = vlaneseq
        %v795 = vshrl.u32 %v794, 7
        %v796 = vsub.s32 %v793, %v795
        %v797 = vrot.slane %v788, %v796
        %v799 = vunpack.c.l.s4 1983009808
        %v800 = vunpack.c.0.s8 %v799
        %v801 = vlaneseq
        %v802 = vshrl.u32 %v801, 7
        %v803 = vsub.s32 %v800, %v802
        %v804 = vrot.slane %v790, %v803
        %807 = vst [vmem:[#allocation2] sm:$0x33] %v797
        %808 = vst.msk [vmem:[#allocation2 + $0x8] sm:$0x3] %vm331, %v804
        %v809 = vld [vmem:[#allocation3] sm:$0x3f]
        %v811 = vcombine.low %v809, %v809
        %v813 = vunpack.c.l.s4 1983009808
        %v814 = vunpack.c.0.s8 %v813
        %v815 = vlaneseq
        %v816 = vshrl.u32 %v815, 7
        %v817 = vsub.s32 %v814, %v816
        %v818 = vrot.slane %v811, %v817
        %v820 = vunpack.c.l.s4 1983009808
        %v821 = vunpack.c.0.s8 %v820
        %v822 = vlaneseq
        %v823 = vshrl.u32 %v822, 7
        %v824 = vsub.s32 %v821, %v823
        %v825 = vrot.slane %v809, %v824
        %826 = vrot.lane.b32.xlu0 %v818, 127
        %v827 = vpop.permute.xlu0 %826
        %828 = vrot.lane.b32.xlu0 %v825, 127
        %v829 = vpop.permute.xlu0 %828
        %v830 = vrot.slane %v827, 4
        %v831 = vrot.slane %v829, 4
        %v832 = vsel %vm356, %v830, %v831
        %v833 = vsel %vm358, %v827, %v832
        %836 = vst [vmem:[#allocation2] sm:$0xcc] %v833
        %837 = vst.msk [vmem:[#allocation2 + $0x8] sm:$0xc] %vm363, %v829
        %v838 = vld [vmem:[#allocation3] sm:$0x3f]
        %v840 = vcombine.high %v838, %v838
        %v842 = vunpack.c.l.s4 1983009808
        %v843 = vunpack.c.0.s8 %v842
        %v844 = vlaneseq
        %v845 = vshrl.u32 %v844, 7
        %v846 = vsub.s32 %v843, %v845
        %v847 = vrot.slane %v838, %v846
        %v849 = vunpack.c.l.s4 1983009808
        %v850 = vunpack.c.0.s8 %v849
        %v851 = vlaneseq
        %v852 = vshrl.u32 %v851, 7
        %v853 = vsub.s32 %v850, %v852
        %v854 = vrot.slane %v840, %v853
        %855 = vrot.lane.b32.xlu0 %v847, 126
        %v856 = vpop.permute.xlu0 %855
        %857 = vrot.lane.b32.xlu0 %v854, 126
        %v858 = vpop.permute.xlu0 %857
        %v859 = vrot.slane %v856, 4
        %v860 = vrot.slane %v858, 4
        %v861 = vsel %vm356, %v859, %v860
        %v862 = vsel %vm389, %v856, %v861
        %865 = vst [vmem:[#allocation2 + $0xc] sm:$0x33] %v862
        %866 = vst.msk [vmem:[#allocation2 + $0x14] sm:$0x3] %vm331, %v858
        %v867 = vld [vmem:[#allocation3] sm:$0x3f]
        %v869 = vcombine.low %v867, %v867
        %v871 = vunpack.c.l.s4 1983009808
        %v872 = vunpack.c.0.s8 %v871
        %v873 = vlaneseq
        %v874 = vshrl.u32 %v873, 7
        %v875 = vsub.s32 %v872, %v874
        %v876 = vrot.slane %v869, %v875
        %v878 = vunpack.c.l.s4 1983009808
        %v879 = vunpack.c.0.s8 %v878
        %v880 = vlaneseq
        %v881 = vshrl.u32 %v880, 7
        %v882 = vsub.s32 %v879, %v881
        %v883 = vrot.slane %v867, %v882
        %884 = vrot.lane.b32.xlu0 %v876, 110
        %v885 = vpop.permute.xlu0 %884
        %886 = vrot.lane.b32.xlu0 %v883, 110
        %v887 = vpop.permute.xlu0 %886
        %v888 = vrot.slane %v885, 4
        %v889 = vrot.slane %v887, 4
        %v890 = vsel %vm356, %v888, %v889
        %v891 = vsel %vm419, %v885, %v890
        %894 = vst [vmem:[#allocation2 + $0xc] sm:$0xcc] %v891
        %895 = vst.msk [vmem:[#allocation2 + $0x14] sm:$0xc] %vm363, %v887
        %v896 = vld [vmem:[#allocation3] sm:$0x3f]
        %v898 = vcombine.high %v896, %v896
        %v900 = vunpack.c.l.s4 1983009808
        %v901 = vunpack.c.0.s8 %v900
        %v902 = vlaneseq
        %v903 = vshrl.u32 %v902, 7
        %v904 = vsub.s32 %v901, %v903
        %v905 = vrot.slane %v896, %v904
        %v907 = vunpack.c.l.s4 1983009808
        %v908 = vunpack.c.0.s8 %v907
        %v909 = vlaneseq
        %v910 = vshrl.u32 %v909, 7
        %v911 = vsub.s32 %v908, %v910
        %v912 = vrot.slane %v898, %v911
        %913 = vrot.lane.b32.xlu0 %v905, 109
        %v914 = vpop.permute.xlu0 %913
        %915 = vrot.lane.b32.xlu0 %v912, 109
        %v916 = vpop.permute.xlu0 %915
        %v917 = vrot.slane %v914, 4
        %v918 = vrot.slane %v916, 4
        %v919 = vsel %vm356, %v917, %v918
        %v920 = vsel %vm449, %v914, %v919
        %923 = vst [vmem:[#allocation2 + $0x18] sm:$0x33] %v920
        %924 = vst.msk [vmem:[#allocation2 + $0x20] sm:$0x3] %vm331, %v916
        %v925 = vld [vmem:[#allocation3] sm:$0x3f]
        %v927 = vcombine.low %v925, %v925
        %v929 = vunpack.c.l.s4 1983009808
        %v930 = vunpack.c.0.s8 %v929
        %v931 = vlaneseq
        %v932 = vshrl.u32 %v931, 7
        %v933 = vsub.s32 %v930, %v932
        %v934 = vrot.slane %v927, %v933
        %v936 = vunpack.c.l.s4 1983009808
        %v937 = vunpack.c.0.s8 %v936
        %v938 = vlaneseq
        %v939 = vshrl.u32 %v938, 7
        %v940 = vsub.s32 %v937, %v939
        %v941 = vrot.slane %v925, %v940
        %942 = vrot.lane.b32.xlu0 %v934, 108
        %v943 = vpop.permute.xlu0 %942
        %944 = vrot.lane.b32.xlu0 %v941, 108
        %v945 = vpop.permute.xlu0 %944
        %v946 = vrot.slane %v943, 4
        %v947 = vrot.slane %v945, 4
        %v948 = vsel %vm356, %v946, %v947
        %v949 = vsel %vm479, %v943, %v948
        %952 = vst [vmem:[#allocation2 + $0x18] sm:$0xcc] %v949
        %953 = vst.msk [vmem:[#allocation2 + $0x20] sm:$0xc] %vm363, %v945
        %v954 = vld [vmem:[#allocation3] sm:$0x3f]
        %v956 = vcombine.high %v954, %v954
        %v958 = vunpack.c.l.s4 1983009808
        %v959 = vunpack.c.0.s8 %v958
        %v960 = vlaneseq
        %v961 = vshrl.u32 %v960, 7
        %v962 = vsub.s32 %v959, %v961
        %v963 = vrot.slane %v954, %v962
        %v965 = vunpack.c.l.s4 1983009808
        %v966 = vunpack.c.0.s8 %v965
        %v967 = vlaneseq
        %v968 = vshrl.u32 %v967, 7
        %v969 = vsub.s32 %v966, %v968
        %v970 = vrot.slane %v956, %v969
        %971 = vrot.lane.b32.xlu0 %v963, 92
        %v972 = vpop.permute.xlu0 %971
        %973 = vrot.lane.b32.xlu0 %v970, 92
        %v974 = vpop.permute.xlu0 %973
        %v975 = vrot.slane %v972, 4
        %v976 = vrot.slane %v974, 4
        %v977 = vsel %vm356, %v975, %v976
        %v978 = vsel %vm509, %v972, %v977
        %981 = vst [vmem:[#allocation2 + $0x24] sm:$0x33] %v978
        %982 = vst.msk [vmem:[#allocation2 + $0x2c] sm:$0x3] %vm331, %v974
        %v983 = vld [vmem:[#allocation3] sm:$0x3f]
        %v985 = vcombine.low %v983, %v983
        %v987 = vunpack.c.l.s4 1983009808
        %v988 = vunpack.c.0.s8 %v987
        %v989 = vlaneseq
        %v990 = vshrl.u32 %v989, 7
        %v991 = vsub.s32 %v988, %v990
        %v992 = vrot.slane %v985, %v991
        %v994 = vunpack.c.l.s4 1983009808
        %v995 = vunpack.c.0.s8 %v994
        %v996 = vlaneseq
        %v997 = vshrl.u32 %v996, 7
        %v998 = vsub.s32 %v995, %v997
        %v999 = vrot.slane %v983, %v998
        %1000 = vrot.lane.b32.xlu0 %v992, 91
        %v1001 = vpop.permute.xlu0 %1000
        %1002 = vrot.lane.b32.xlu0 %v999, 91
        %v1003 = vpop.permute.xlu0 %1002
        %v1004 = vrot.slane %v1001, 4
        %v1005 = vrot.slane %v1003, 4
        %v1006 = vsel %vm356, %v1004, %v1005
        %v1007 = vsel %vm539, %v1001, %v1006
        %1010 = vst [vmem:[#allocation2 + $0x24] sm:$0xcc] %v1007
        %1011 = vst.msk [vmem:[#allocation2 + $0x2c] sm:$0xc] %vm363, %v1003
        %v1012 = vld [vmem:[#allocation3] sm:$0x3f]
        %v1014 = vcombine.high %v1012, %v1012
        %v1016 = vunpack.c.l.s4 1983009808
        %v1017 = vunpack.c.0.s8 %v1016
        %v1018 = vlaneseq
        %v1019 = vshrl.u32 %v1018, 7
        %v1020 = vsub.s32 %v1017, %v1019
        %v1021 = vrot.slane %v1012, %v1020
        %v1023 = vunpack.c.l.s4 1983009808
        %v1024 = vunpack.c.0.s8 %v1023
        %v1025 = vlaneseq
        %v1026 = vshrl.u32 %v1025, 7
        %v1027 = vsub.s32 %v1024, %v1026
        %v1028 = vrot.slane %v1014, %v1027
        %1029 = vrot.lane.b32.xlu0 %v1021, 90
        %v1030 = vpop.permute.xlu0 %1029
        %1031 = vrot.lane.b32.xlu0 %v1028, 90
        %v1032 = vpop.permute.xlu0 %1031
        %v1033 = vrot.slane %v1030, 4
        %v1034 = vrot.slane %v1032, 4
        %v1035 = vsel %vm356, %v1033, %v1034
        %v1036 = vsel %vm569, %v1030, %v1035
        %1039 = vst [vmem:[#allocation2 + $0x30] sm:$0x33] %v1036
        %1040 = vst.msk [vmem:[#allocation2 + $0x38] sm:$0x3] %vm331, %v1032
        %v1041 = vld [vmem:[%s3] sm:$0x3]
        %v1042 = vld [vmem:[#allocation2] sm:$0xff]
        %v1043 = vld [vmem:[#allocation2 + $0x8] sm:$0xf]
        %v1044 = vld [vmem:[#allocation2 + $0xc] sm:$0xff]
        %v1045 = vld [vmem:[#allocation2 + $0x14] sm:$0xf]
        %v1046 = vld [vmem:[#allocation2 + $0x18] sm:$0xff]
        %v1047 = vld [vmem:[#allocation2 + $0x20] sm:$0xf]
        %v1048 = vld [vmem:[#allocation2 + $0x24] sm:$0xff]
        %v1049 = vld [vmem:[#allocation2 + $0x2c] sm:$0xf]
        %v1050 = vld [vmem:[#allocation2 + $0x30] sm:$0x33]
        %v1051 = vld [vmem:[#allocation2 + $0x38] sm:$0x3]
        %v1052 = vld [vmem:[%s4] sm:$0xf]
        %1054 = vset.pattern.permute.xlu0 0
        %1055 = vperm.xlu0 %1054, %v1052
        %v1056 = vpop.permute.xlu0 %1055
        %v1068 = vunpack.c.l.b16 %v1042
        %v1069 = vunpack.c.h.b16 %v1042
        %v1070 = vunpack.c.l.b16 %v1043
        %v1071 = vunpack.c.l.b16 %v1044
        %v1072 = vunpack.c.h.b16 %v1044
        %v1073 = vunpack.c.l.b16 %v1045
        %v1074 = vunpack.c.l.b16 %v1046
        %v1075 = vunpack.c.h.b16 %v1046
        %v1076 = vunpack.c.l.b16 %v1047
        %v1077 = vunpack.c.l.b16 %v1048
        %v1078 = vunpack.c.h.b16 %v1048
        %v1079 = vunpack.c.l.b16 %v1049
        %v1080 = vunpack.c.l.b16 %v1050
        %v1081 = vunpack.c.h.b16 %v1050
        %v1082 = vunpack.c.l.b16 %v1051
        %v1083 = vpack.c.b16 %v1071, %v1068
        %v1084 = vpack.c.b16 %v1072, %v1069
        %v1085 = vpack.c.b16 %v1073, %v1070
        %v1086 = vpack.c.b16 %v1077, %v1074
        %v1087 = vpack.c.b16 %v1078, %v1075
        %v1088 = vpack.c.b16 %v1079, %v1076
        %v1089 = vpack.c.b16 %v1080, %v1080
        %v1090 = vpack.c.b16 %v1081, %v1081
        %v1091 = vpack.c.b16 %v1082, %v1082
        %v1099 = vsel %vm632, %v1041, 0
        %v1102 = vsel %vm636, %v1089, 0
        %v1105 = vsel %vm636, %v1090, 0
        %v1108 = vsel %vm636, %v1091, 0
        %1110 = vmatprep.subr.bf16.mxu0 %v1084
        %1111 = vmatpush1.bf16.msra.mxu0 %v1083
        %1112 = vmatprep.subr.bf16.mxu0 %v1087
        %1113 = vmatpush1.bf16.msra.mxu0 %v1086
        %1114 = vmatprep.subr.bf16.mxu0 %v1105
        %1115 = vmatpush1.bf16.msra.mxu0 %v1102
        %1116 = vmatprep.subr.bf16.mxu0 0
        %1117 = vmatpush1.bf16.msra.mxu0 0
        %1118 = vmatprep.subr.bf16.mxu0 0
        %1119 = vmatpush1.bf16.msra.mxu0 0
        %1120 = vmatprep.subr.bf16.mxu0 0
        %1121 = vmatpush1.bf16.msra.mxu0 0
        %1122 = vmatprep.subr.bf16.mxu0 0
        %1123 = vmatpush1.bf16.msra.mxu0 0
        %1124 = vmatprep.subr.bf16.mxu0 0
        %1125 = vmatpush1.bf16.msra.mxu0 0
        %1126 = vmatprep.subr.bf16.mxu0 0
        %1127 = vmatpush1.bf16.msra.mxu0 0
        %1128 = vmatprep.subr.bf16.mxu0 0
        %1129 = vmatpush1.bf16.msra.mxu0 0
        %1130 = vmatprep.subr.bf16.mxu0 0
        %1131 = vmatpush1.bf16.msra.mxu0 0
        %1132 = vmatprep.subr.bf16.mxu0 0
        %1133 = vmatpush1.bf16.msra.mxu0 0
        %1134 = vmatprep.subr.bf16.mxu0 0
        %1135 = vmatpush1.bf16.msra.mxu0 0
        %1136 = vmatprep.subr.bf16.mxu0 0
        %1137 = vmatpush1.bf16.msra.mxu0 0
        %1138 = vmatprep.subr.bf16.mxu0 0
        %1139 = vmatpush1.bf16.msra.mxu0 0
        %1140 = vmatprep.subr.bf16.mxu0 0
        %1141 = vmatpush1.bf16.msra.mxu0 0
        %1142 = vmatprep.mubr.bf16.mxu0 0
        %1143 = vmatmul.mubr.bf16.gmra.mrb[0].mxu0 %v1099
        %v1144 = vpop.f32.mrb[0].mxu0
        %v1145 = vadd.f32 %v1056, %v1144
        %v1146 = vpop.f32.mrb[0].mxu0
        %v1147 = vadd.f32 %v1056, %v1146
        %v1148 = vpop.f32.mrb[0].mxu0
        %v1149 = vpop.f32.mrb[0].mxu0
        %1150 = vdwg.mxu0
        %1151 = vmatprep.subr.bf16.mxu0 0
        %1152 = vmatpush1.bf16.msra.mxu0 %v1085
        %1153 = vmatprep.subr.bf16.mxu0 0
        %1154 = vmatpush1.bf16.msra.mxu0 %v1088
        %1155 = vmatprep.subr.bf16.mxu0 0
        %1156 = vmatpush1.bf16.msra.mxu0 %v1108
        %1157 = vmatprep.subr.bf16.mxu0 0
        %1158 = vmatpush1.bf16.msra.mxu0 0
        %1159 = vmatprep.subr.bf16.mxu0 0
        %1160 = vmatpush1.bf16.msra.mxu0 0
        %1161 = vmatprep.subr.bf16.mxu0 0
        %1162 = vmatpush1.bf16.msra.mxu0 0
        %1163 = vmatprep.subr.bf16.mxu0 0
        %1164 = vmatpush1.bf16.msra.mxu0 0
        %1165 = vmatprep.subr.bf16.mxu0 0
        %1166 = vmatpush1.bf16.msra.mxu0 0
        %1167 = vmatprep.subr.bf16.mxu0 0
        %1168 = vmatpush1.bf16.msra.mxu0 0
        %1169 = vmatprep.subr.bf16.mxu0 0
        %1170 = vmatpush1.bf16.msra.mxu0 0
        %1171 = vmatprep.subr.bf16.mxu0 0
        %1172 = vmatpush1.bf16.msra.mxu0 0
        %1173 = vmatprep.subr.bf16.mxu0 0
        %1174 = vmatpush1.bf16.msra.mxu0 0
        %1175 = vmatprep.subr.bf16.mxu0 0
        %1176 = vmatpush1.bf16.msra.mxu0 0
        %1177 = vmatprep.subr.bf16.mxu0 0
        %1178 = vmatpush1.bf16.msra.mxu0 0
        %1179 = vmatprep.subr.bf16.mxu0 0
        %1180 = vmatpush1.bf16.msra.mxu0 0
        %1181 = vmatprep.subr.bf16.mxu0 0
        %1182 = vmatpush1.bf16.msra.mxu0 0
        %1183 = vmatprep.mubr.bf16.mxu0 0
        %1184 = vmatmul.mubr.bf16.gmra.mrb[0].mxu0 %v1099
        %v1185 = vpop.f32.mrb[0].mxu0
        %v1186 = vadd.f32 %v1056, %v1185
        %v1187 = vpop.f32.mrb[0].mxu0
        %v1188 = vpop.f32.mrb[0].mxu0
        %v1189 = vpop.f32.mrb[0].mxu0
        %1190 = vdwg.mxu0
        %v1191 = vmax.f32 %v1145, 0.0
        %v1192 = vmax.f32 %v1147, 0.0
        %v1193 = vmax.f32 %v1186, 0.0
        %v1194 = vpack.c.bf16 %v1191, %v1191
        %v1195 = vpack.c.bf16 %v1192, %v1192
        %v1196 = vpack.c.bf16 %v1193, %v1193
        %v1197 = vld [vmem:[#allocation7] sm:$0xff]
        %v1198 = vld [vmem:[#allocation7 + $0x8] sm:$0xff]
        %v1199 = vld [vmem:[#allocation7 + $0x10] sm:$0xff]
        %v1200 = vld [vmem:[#allocation7 + $0x18] sm:$0xff]
        %v1201 = vld [vmem:[#allocation7 + $0x20] sm:$0xff]
        %v1202 = vld [vmem:[#allocation7 + $0x28] sm:$0xff]
        %v1203 = vld [vmem:[#allocation7 + $0x30] sm:$0xff]
        %v1204 = vld [vmem:[#allocation7 + $0x38] sm:$0xff]
        %v1205 = vld [vmem:[#allocation7 + $0x40] sm:$0xff]
        %v1206 = vld [vmem:[#allocation7 + $0x48] sm:$0xff]
        %v1207 = vld [vmem:[#allocation7 + $0x50] sm:$0xff]
        %v1208 = vld [vmem:[#allocation7 + $0x58] sm:$0xff]
        %v1209 = vld [vmem:[#allocation7 + $0x60] sm:$0xff]
        %v1210 = vld [vmem:[#allocation7 + $0x68] sm:$0xff]
        %v1211 = vld [vmem:[#allocation7 + $0x70] sm:$0xff]
        %v1212 = vld [vmem:[#allocation7 + $0x78] sm:$0xff]
        %v1213 = vld [vmem:[#allocation7 + $0x80] sm:$0xff]
        %v1214 = vld [vmem:[#allocation7 + $0x88] sm:$0xff]
        %v1215 = vld [vmem:[#allocation7 + $0x90] sm:$0xff]
        %v1216 = vld [vmem:[#allocation7 + $0x98] sm:$0xff]
        %v1217 = vld [vmem:[#allocation7 + $0xa0] sm:$0xff]
        %v1218 = vld [vmem:[#allocation7 + $0xa8] sm:$0xff]
        %v1219 = vld [vmem:[#allocation7 + $0xb0] sm:$0xff]
        %v1220 = vld [vmem:[#allocation7 + $0xb8] sm:$0xff]
        %v1221 = vld [vmem:[#allocation7 + $0xc0] sm:$0xff]
        %v1222 = vld [vmem:[#allocation7 + $0xc8] sm:$0xff]
        %v1223 = vld [vmem:[#allocation7 + $0xd0] sm:$0xff]
        %v1224 = vld [vmem:[#allocation7 + $0xd8] sm:$0xff]
        %v1225 = vld [vmem:[#allocation7 + $0xe0] sm:$0xff]
        %v1226 = vld [vmem:[#allocation7 + $0xe8] sm:$0xff]
        %v1227 = vld [vmem:[#allocation7 + $0xf0] sm:$0xff]
        %v1228 = vld [vmem:[#allocation7 + $0xf8] sm:$0xff]
        %v1229 = vld [vmem:[#allocation7 + $0x100] sm:$0xff]
        %v1230 = vld [vmem:[#allocation7 + $0x108] sm:$0xff]
        %v1231 = vld [vmem:[#allocation7 + $0x110] sm:$0xff]
        %v1232 = vld [vmem:[#allocation7 + $0x118] sm:$0xff]
        %v1233 = vld [vmem:[#allocation7 + $0x120] sm:$0xff]
        %v1234 = vld [vmem:[#allocation7 + $0x128] sm:$0xff]
        %v1235 = vld [vmem:[#allocation7 + $0x130] sm:$0xff]
        %v1236 = vld [vmem:[#allocation7 + $0x138] sm:$0xff]
        %v1237 = vld [vmem:[#allocation7 + $0x140] sm:$0xff]
        %v1238 = vld [vmem:[#allocation7 + $0x148] sm:$0xff]
        %v1239 = vld [vmem:[#allocation7 + $0x150] sm:$0xff]
        %v1240 = vld [vmem:[#allocation7 + $0x158] sm:$0xff]
        %v1241 = vld [vmem:[#allocation7 + $0x160] sm:$0xff]
        %v1242 = vld [vmem:[#allocation7 + $0x168] sm:$0xff]
        %v1243 = vld [vmem:[#allocation7 + $0x170] sm:$0xff]
        %v1244 = vld [vmem:[#allocation7 + $0x178] sm:$0xff]
        %v1245 = vld [vmem:[#allocation7 + $0x180] sm:$0xff]
        %v1246 = vld [vmem:[#allocation7 + $0x188] sm:$0xff]
        %v1247 = vld [vmem:[#allocation7 + $0x190] sm:$0xff]
        %v1248 = vld [vmem:[#allocation7 + $0x198] sm:$0xff]
        %v1249 = vld [vmem:[#allocation7 + $0x1a0] sm:$0xff]
        %v1250 = vld [vmem:[#allocation7 + $0x1a8] sm:$0xff]
        %v1251 = vld [vmem:[#allocation7 + $0x1b0] sm:$0xff]
        %v1252 = vld [vmem:[#allocation7 + $0x1b8] sm:$0xff]
        %v1253 = vld [vmem:[#allocation7 + $0x1c0] sm:$0xff]
        %v1254 = vld [vmem:[#allocation7 + $0x1c8] sm:$0xff]
        %v1255 = vld [vmem:[#allocation7 + $0x1d0] sm:$0xff]
        %v1256 = vld [vmem:[#allocation7 + $0x1d8] sm:$0xff]
        %v1257 = vld [vmem:[#allocation7 + $0x1e0] sm:$0xff]
        %v1258 = vld [vmem:[#allocation7 + $0x1e8] sm:$0xff]
        %v1259 = vld [vmem:[#allocation7 + $0x1f0] sm:$0xff]
        %v1260 = vld [vmem:[#allocation7 + $0x1f8] sm:$0xff]
        %v1261 = vld [vmem:[#allocation7 + $0x200] sm:$0xff]
        %v1262 = vld [vmem:[#allocation7 + $0x208] sm:$0xff]
        %v1263 = vld [vmem:[#allocation7 + $0x210] sm:$0xff]
        %v1264 = vld [vmem:[#allocation7 + $0x218] sm:$0xff]
        %v1265 = vld [vmem:[#allocation7 + $0x220] sm:$0xff]
        %v1266 = vld [vmem:[#allocation7 + $0x228] sm:$0xff]
        %v1267 = vld [vmem:[#allocation7 + $0x230] sm:$0xff]
        %v1268 = vld [vmem:[#allocation7 + $0x238] sm:$0xff]
        %v1269 = vld [vmem:[#allocation7 + $0x240] sm:$0xff]
        %v1270 = vld [vmem:[#allocation7 + $0x248] sm:$0xff]
        %v1271 = vld [vmem:[#allocation7 + $0x250] sm:$0xff]
        %v1272 = vld [vmem:[#allocation7 + $0x258] sm:$0xff]
        %v1273 = vld [vmem:[#allocation7 + $0x260] sm:$0xff]
        %v1274 = vld [vmem:[#allocation7 + $0x268] sm:$0xff]
        %v1275 = vld [vmem:[#allocation7 + $0x270] sm:$0xff]
        %v1276 = vld [vmem:[#allocation7 + $0x278] sm:$0xff]
        %v1277 = vld [vmem:[#allocation7 + $0x280] sm:$0xff]
        %v1278 = vld [vmem:[#allocation7 + $0x288] sm:$0xff]
        %v1279 = vld [vmem:[#allocation7 + $0x290] sm:$0xff]
        %v1280 = vld [vmem:[#allocation7 + $0x298] sm:$0xff]
        %v1281 = vld [vmem:[#allocation7 + $0x2a0] sm:$0xff]
        %v1282 = vld [vmem:[#allocation7 + $0x2a8] sm:$0xff]
        %v1283 = vld [vmem:[#allocation7 + $0x2b0] sm:$0xff]
        %v1284 = vld [vmem:[#allocation7 + $0x2b8] sm:$0xff]
        %v1285 = vld [vmem:[#allocation7 + $0x2c0] sm:$0xff]
        %v1286 = vld [vmem:[#allocation7 + $0x2c8] sm:$0xff]
        %v1287 = vld [vmem:[#allocation7 + $0x2d0] sm:$0xff]
        %v1288 = vld [vmem:[#allocation7 + $0x2d8] sm:$0xff]
        %v1289 = vld [vmem:[#allocation7 + $0x2e0] sm:$0xff]
        %v1290 = vld [vmem:[#allocation7 + $0x2e8] sm:$0xff]
        %v1291 = vld [vmem:[#allocation7 + $0x2f0] sm:$0xff]
        %v1292 = vld [vmem:[#allocation7 + $0x2f8] sm:$0xff]
        %v1293 = vld [vmem:[#allocation7 + $0x300] sm:$0xff]
        %v1294 = vld [vmem:[#allocation7 + $0x308] sm:$0xff]
        %v1295 = vld [vmem:[#allocation7 + $0x310] sm:$0xff]
        %v1296 = vld [vmem:[#allocation7 + $0x318] sm:$0xff]
        %v1297 = vld [vmem:[#allocation7 + $0x320] sm:$0xff]
        %v1298 = vld [vmem:[#allocation7 + $0x328] sm:$0xff]
        %v1299 = vld [vmem:[#allocation7 + $0x330] sm:$0xff]
        %v1300 = vld [vmem:[#allocation7 + $0x338] sm:$0xff]
        %v1301 = vld [vmem:[#allocation7 + $0x340] sm:$0xff]
        %v1302 = vld [vmem:[#allocation7 + $0x348] sm:$0xff]
        %v1303 = vld [vmem:[#allocation7 + $0x350] sm:$0xff]
        %v1304 = vld [vmem:[#allocation7 + $0x358] sm:$0xff]
        %v1305 = vld [vmem:[#allocation7 + $0x360] sm:$0xff]
        %v1306 = vld [vmem:[#allocation7 + $0x368] sm:$0xff]
        %v1307 = vld [vmem:[#allocation7 + $0x370] sm:$0xff]
        %v1308 = vld [vmem:[#allocation7 + $0x378] sm:$0xff]
        %v1309 = vld [vmem:[#allocation7 + $0x380] sm:$0xff]
        %v1310 = vld [vmem:[#allocation7 + $0x388] sm:$0xff]
        %v1311 = vld [vmem:[#allocation7 + $0x390] sm:$0xff]
        %v1312 = vld [vmem:[#allocation7 + $0x398] sm:$0xff]
        %v1313 = vld [vmem:[#allocation7 + $0x3a0] sm:$0xff]
        %v1314 = vld [vmem:[#allocation7 + $0x3a8] sm:$0xff]
        %v1315 = vld [vmem:[#allocation7 + $0x3b0] sm:$0xff]
        %v1316 = vld [vmem:[#allocation7 + $0x3b8] sm:$0xff]
        %v1317 = vld [vmem:[#allocation7 + $0x3c0] sm:$0xff]
        %v1318 = vld [vmem:[#allocation7 + $0x3c8] sm:$0xff]
        %v1319 = vld [vmem:[#allocation7 + $0x3d0] sm:$0xff]
        %v1320 = vld [vmem:[#allocation7 + $0x3d8] sm:$0xff]
        %v1321 = vld [vmem:[#allocation7 + $0x3e0] sm:$0xff]
        %v1322 = vld [vmem:[#allocation7 + $0x3e8] sm:$0xff]
        %v1323 = vld [vmem:[#allocation7 + $0x3f0] sm:$0xff]
        %v1324 = vld [vmem:[#allocation7 + $0x3f8] sm:$0xff]
        %v1325 = vld [vmem:[#allocation7 + $0x400] sm:$0xff]
        %v1326 = vld [vmem:[#allocation7 + $0x408] sm:$0xff]
        %v1327 = vld [vmem:[#allocation7 + $0x410] sm:$0xff]
        %v1328 = vld [vmem:[#allocation7 + $0x418] sm:$0xff]
        %v1329 = vld [vmem:[#allocation7 + $0x420] sm:$0xff]
        %v1330 = vld [vmem:[#allocation7 + $0x428] sm:$0xff]
        %v1331 = vld [vmem:[#allocation7 + $0x430] sm:$0xff]
        %v1332 = vld [vmem:[#allocation7 + $0x438] sm:$0xff]
        %v1333 = vld [vmem:[#allocation7 + $0x440] sm:$0xff]
        %v1334 = vld [vmem:[#allocation7 + $0x448] sm:$0xff]
        %v1335 = vld [vmem:[#allocation7 + $0x450] sm:$0xff]
        %v1336 = vld [vmem:[#allocation7 + $0x458] sm:$0xff]
        %v1337 = vld [vmem:[#allocation7 + $0x460] sm:$0x77]
        %v1338 = vld [vmem:[#allocation7 + $0x468] sm:$0x77]
        %v1339 = vld [vmem:[#allocation7 + $0x470] sm:$0x77]
        %v1340 = vld [vmem:[#allocation7 + $0x478] sm:$0x77]
        %v1485 = vunpack.c.l.b16 %v1197
        %v1486 = vunpack.c.h.b16 %v1197
        %v1487 = vunpack.c.l.b16 %v1198
        %v1488 = vunpack.c.h.b16 %v1198
        %v1489 = vunpack.c.l.b16 %v1199
        %v1490 = vunpack.c.h.b16 %v1199
        %v1491 = vunpack.c.l.b16 %v1200
        %v1492 = vunpack.c.h.b16 %v1200
        %v1493 = vunpack.c.l.b16 %v1201
        %v1494 = vunpack.c.h.b16 %v1201
        %v1495 = vunpack.c.l.b16 %v1202
        %v1496 = vunpack.c.h.b16 %v1202
        %v1497 = vunpack.c.l.b16 %v1203
        %v1498 = vunpack.c.h.b16 %v1203
        %v1499 = vunpack.c.l.b16 %v1204
        %v1500 = vunpack.c.h.b16 %v1204
        %v1501 = vunpack.c.l.b16 %v1205
        %v1502 = vunpack.c.h.b16 %v1205
        %v1503 = vunpack.c.l.b16 %v1206
        %v1504 = vunpack.c.h.b16 %v1206
        %v1505 = vunpack.c.l.b16 %v1207
        %v1506 = vunpack.c.h.b16 %v1207
        %v1507 = vunpack.c.l.b16 %v1208
        %v1508 = vunpack.c.h.b16 %v1208
        %v1509 = vunpack.c.l.b16 %v1209
        %v1510 = vunpack.c.h.b16 %v1209
        %v1511 = vunpack.c.l.b16 %v1210
        %v1512 = vunpack.c.h.b16 %v1210
        %v1513 = vunpack.c.l.b16 %v1211
        %v1514 = vunpack.c.h.b16 %v1211
        %v1515 = vunpack.c.l.b16 %v1212
        %v1516 = vunpack.c.h.b16 %v1212
        %v1517 = vunpack.c.l.b16 %v1213
        %v1518 = vunpack.c.h.b16 %v1213
        %v1519 = vunpack.c.l.b16 %v1214
        %v1520 = vunpack.c.h.b16 %v1214
        %v1521 = vunpack.c.l.b16 %v1215
        %v1522 = vunpack.c.h.b16 %v1215
        %v1523 = vunpack.c.l.b16 %v1216
        %v1524 = vunpack.c.h.b16 %v1216
        %v1525 = vunpack.c.l.b16 %v1217
        %v1526 = vunpack.c.h.b16 %v1217
        %v1527 = vunpack.c.l.b16 %v1218
        %v1528 = vunpack.c.h.b16 %v1218
        %v1529 = vunpack.c.l.b16 %v1219
        %v1530 = vunpack.c.h.b16 %v1219
        %v1531 = vunpack.c.l.b16 %v1220
        %v1532 = vunpack.c.h.b16 %v1220
        %v1533 = vunpack.c.l.b16 %v1221
        %v1534 = vunpack.c.h.b16 %v1221
        %v1535 = vunpack.c.l.b16 %v1222
        %v1536 = vunpack.c.h.b16 %v1222
        %v1537 = vunpack.c.l.b16 %v1223
        %v1538 = vunpack.c.h.b16 %v1223
        %v1539 = vunpack.c.l.b16 %v1224
        %v1540 = vunpack.c.h.b16 %v1224
        %v1541 = vunpack.c.l.b16 %v1225
        %v1542 = vunpack.c.h.b16 %v1225
        %v1543 = vunpack.c.l.b16 %v1226
        %v1544 = vunpack.c.h.b16 %v1226
        %v1545 = vunpack.c.l.b16 %v1227
        %v1546 = vunpack.c.h.b16 %v1227
        %v1547 = vunpack.c.l.b16 %v1228
        %v1548 = vunpack.c.h.b16 %v1228
        %v1549 = vunpack.c.l.b16 %v1229
        %v1550 = vunpack.c.h.b16 %v1229
        %v1551 = vunpack.c.l.b16 %v1230
        %v1552 = vunpack.c.h.b16 %v1230
        %v1553 = vunpack.c.l.b16 %v1231
        %v1554 = vunpack.c.h.b16 %v1231
        %v1555 = vunpack.c.l.b16 %v1232
        %v1556 = vunpack.c.h.b16 %v1232
        %v1557 = vunpack.c.l.b16 %v1233
        %v1558 = vunpack.c.h.b16 %v1233
        %v1559 = vunpack.c.l.b16 %v1234
        %v1560 = vunpack.c.h.b16 %v1234
        %v1561 = vunpack.c.l.b16 %v1235
        %v1562 = vunpack.c.h.b16 %v1235
        %v1563 = vunpack.c.l.b16 %v1236
        %v1564 = vunpack.c.h.b16 %v1236
        %v1565 = vunpack.c.l.b16 %v1237
        %v1566 = vunpack.c.h.b16 %v1237
        %v1567 = vunpack.c.l.b16 %v1238
        %v1568 = vunpack.c.h.b16 %v1238
        %v1569 = vunpack.c.l.b16 %v1239
        %v1570 = vunpack.c.h.b16 %v1239
        %v1571 = vunpack.c.l.b16 %v1240
        %v1572 = vunpack.c.h.b16 %v1240
        %v1573 = vunpack.c.l.b16 %v1241
        %v1574 = vunpack.c.h.b16 %v1241
        %v1575 = vunpack.c.l.b16 %v1242
        %v1576 = vunpack.c.h.b16 %v1242
        %v1577 = vunpack.c.l.b16 %v1243
        %v1578 = vunpack.c.h.b16 %v1243
        %v1579 = vunpack.c.l.b16 %v1244
        %v1580 = vunpack.c.h.b16 %v1244
        %v1581 = vunpack.c.l.b16 %v1245
        %v1582 = vunpack.c.h.b16 %v1245
        %v1583 = vunpack.c.l.b16 %v1246
        %v1584 = vunpack.c.h.b16 %v1246
        %v1585 = vunpack.c.l.b16 %v1247
        %v1586 = vunpack.c.h.b16 %v1247
        %v1587 = vunpack.c.l.b16 %v1248
        %v1588 = vunpack.c.h.b16 %v1248
        %v1589 = vunpack.c.l.b16 %v1249
        %v1590 = vunpack.c.h.b16 %v1249
        %v1591 = vunpack.c.l.b16 %v1250
        %v1592 = vunpack.c.h.b16 %v1250
        %v1593 = vunpack.c.l.b16 %v1251
        %v1594 = vunpack.c.h.b16 %v1251
        %v1595 = vunpack.c.l.b16 %v1252
        %v1596 = vunpack.c.h.b16 %v1252
        %v1597 = vunpack.c.l.b16 %v1253
        %v1598 = vunpack.c.h.b16 %v1253
        %v1599 = vunpack.c.l.b16 %v1254
        %v1600 = vunpack.c.h.b16 %v1254
        %v1601 = vunpack.c.l.b16 %v1255
        %v1602 = vunpack.c.h.b16 %v1255
        %v1603 = vunpack.c.l.b16 %v1256
        %v1604 = vunpack.c.h.b16 %v1256
        %v1605 = vunpack.c.l.b16 %v1257
        %v1606 = vunpack.c.h.b16 %v1257
        %v1607 = vunpack.c.l.b16 %v1258
        %v1608 = vunpack.c.h.b16 %v1258
        %v1609 = vunpack.c.l.b16 %v1259
        %v1610 = vunpack.c.h.b16 %v1259
        %v1611 = vunpack.c.l.b16 %v1260
        %v1612 = vunpack.c.h.b16 %v1260
        %v1613 = vunpack.c.l.b16 %v1261
        %v1614 = vunpack.c.h.b16 %v1261
        %v1615 = vunpack.c.l.b16 %v1262
        %v1616 = vunpack.c.h.b16 %v1262
        %v1617 = vunpack.c.l.b16 %v1263
        %v1618 = vunpack.c.h.b16 %v1263
        %v1619 = vunpack.c.l.b16 %v1264
        %v1620 = vunpack.c.h.b16 %v1264
        %v1621 = vunpack.c.l.b16 %v1265
        %v1622 = vunpack.c.h.b16 %v1265
        %v1623 = vunpack.c.l.b16 %v1266
        %v1624 = vunpack.c.h.b16 %v1266
        %v1625 = vunpack.c.l.b16 %v1267
        %v1626 = vunpack.c.h.b16 %v1267
        %v1627 = vunpack.c.l.b16 %v1268
        %v1628 = vunpack.c.h.b16 %v1268
        %v1629 = vunpack.c.l.b16 %v1269
        %v1630 = vunpack.c.h.b16 %v1269
        %v1631 = vunpack.c.l.b16 %v1270
        %v1632 = vunpack.c.h.b16 %v1270
        %v1633 = vunpack.c.l.b16 %v1271
        %v1634 = vunpack.c.h.b16 %v1271
        %v1635 = vunpack.c.l.b16 %v1272
        %v1636 = vunpack.c.h.b16 %v1272
        %v1637 = vunpack.c.l.b16 %v1273
        %v1638 = vunpack.c.h.b16 %v1273
        %v1639 = vunpack.c.l.b16 %v1274
        %v1640 = vunpack.c.h.b16 %v1274
        %v1641 = vunpack.c.l.b16 %v1275
        %v1642 = vunpack.c.h.b16 %v1275
        %v1643 = vunpack.c.l.b16 %v1276
        %v1644 = vunpack.c.h.b16 %v1276
        %v1645 = vunpack.c.l.b16 %v1277
        %v1646 = vunpack.c.h.b16 %v1277
        %v1647 = vunpack.c.l.b16 %v1278
        %v1648 = vunpack.c.h.b16 %v1278
        %v1649 = vunpack.c.l.b16 %v1279
        %v1650 = vunpack.c.h.b16 %v1279
        %v1651 = vunpack.c.l.b16 %v1280
        %v1652 = vunpack.c.h.b16 %v1280
        %v1653 = vunpack.c.l.b16 %v1281
        %v1654 = vunpack.c.h.b16 %v1281
        %v1655 = vunpack.c.l.b16 %v1282
        %v1656 = vunpack.c.h.b16 %v1282
        %v1657 = vunpack.c.l.b16 %v1283
        %v1658 = vunpack.c.h.b16 %v1283
        %v1659 = vunpack.c.l.b16 %v1284
        %v1660 = vunpack.c.h.b16 %v1284
        %v1661 = vunpack.c.l.b16 %v1285
        %v1662 = vunpack.c.h.b16 %v1285
        %v1663 = vunpack.c.l.b16 %v1286
        %v1664 = vunpack.c.h.b16 %v1286
        %v1665 = vunpack.c.l.b16 %v1287
        %v1666 = vunpack.c.h.b16 %v1287
        %v1667 = vunpack.c.l.b16 %v1288
        %v1668 = vunpack.c.h.b16 %v1288
        %v1669 = vunpack.c.l.b16 %v1289
        %v1670 = vunpack.c.h.b16 %v1289
        %v1671 = vunpack.c.l.b16 %v1290
        %v1672 = vunpack.c.h.b16 %v1290
        %v1673 = vunpack.c.l.b16 %v1291
        %v1674 = vunpack.c.h.b16 %v1291
        %v1675 = vunpack.c.l.b16 %v1292
        %v1676 = vunpack.c.h.b16 %v1292
        %v1677 = vunpack.c.l.b16 %v1293
        %v1678 = vunpack.c.h.b16 %v1293
        %v1679 = vunpack.c.l.b16 %v1294
        %v1680 = vunpack.c.h.b16 %v1294
        %v1681 = vunpack.c.l.b16 %v1295
        %v1682 = vunpack.c.h.b16 %v1295
        %v1683 = vunpack.c.l.b16 %v1296
        %v1684 = vunpack.c.h.b16 %v1296
        %v1685 = vunpack.c.l.b16 %v1297
        %v1686 = vunpack.c.h.b16 %v1297
        %v1687 = vunpack.c.l.b16 %v1298
        %v1688 = vunpack.c.h.b16 %v1298
        %v1689 = vunpack.c.l.b16 %v1299
        %v1690 = vunpack.c.h.b16 %v1299
        %v1691 = vunpack.c.l.b16 %v1300
        %v1692 = vunpack.c.h.b16 %v1300
        %v1693 = vunpack.c.l.b16 %v1301
        %v1694 = vunpack.c.h.b16 %v1301
        %v1695 = vunpack.c.l.b16 %v1302
        %v1696 = vunpack.c.h.b16 %v1302
        %v1697 = vunpack.c.l.b16 %v1303
        %v1698 = vunpack.c.h.b16 %v1303
        %v1699 = vunpack.c.l.b16 %v1304
        %v1700 = vunpack.c.h.b16 %v1304
        %v1701 = vunpack.c.l.b16 %v1305
        %v1702 = vunpack.c.h.b16 %v1305
        %v1703 = vunpack.c.l.b16 %v1306
        %v1704 = vunpack.c.h.b16 %v1306
        %v1705 = vunpack.c.l.b16 %v1307
        %v1706 = vunpack.c.h.b16 %v1307
        %v1707 = vunpack.c.l.b16 %v1308
        %v1708 = vunpack.c.h.b16 %v1308
        %v1709 = vunpack.c.l.b16 %v1309
        %v1710 = vunpack.c.h.b16 %v1309
        %v1711 = vunpack.c.l.b16 %v1310
        %v1712 = vunpack.c.h.b16 %v1310
        %v1713 = vunpack.c.l.b16 %v1311
        %v1714 = vunpack.c.h.b16 %v1311
        %v1715 = vunpack.c.l.b16 %v1312
        %v1716 = vunpack.c.h.b16 %v1312
        %v1717 = vunpack.c.l.b16 %v1313
        %v1718 = vunpack.c.h.b16 %v1313
        %v1719 = vunpack.c.l.b16 %v1314
        %v1720 = vunpack.c.h.b16 %v1314
        %v1721 = vunpack.c.l.b16 %v1315
        %v1722 = vunpack.c.h.b16 %v1315
        %v1723 = vunpack.c.l.b16 %v1316
        %v1724 = vunpack.c.h.b16 %v1316
        %v1725 = vunpack.c.l.b16 %v1317
        %v1726 = vunpack.c.h.b16 %v1317
        %v1727 = vunpack.c.l.b16 %v1318
        %v1728 = vunpack.c.h.b16 %v1318
        %v1729 = vunpack.c.l.b16 %v1319
        %v1730 = vunpack.c.h.b16 %v1319
        %v1731 = vunpack.c.l.b16 %v1320
        %v1732 = vunpack.c.h.b16 %v1320
        %v1733 = vunpack.c.l.b16 %v1321
        %v1734 = vunpack.c.h.b16 %v1321
        %v1735 = vunpack.c.l.b16 %v1322
        %v1736 = vunpack.c.h.b16 %v1322
        %v1737 = vunpack.c.l.b16 %v1323
        %v1738 = vunpack.c.h.b16 %v1323
        %v1739 = vunpack.c.l.b16 %v1324
        %v1740 = vunpack.c.h.b16 %v1324
        %v1741 = vunpack.c.l.b16 %v1325
        %v1742 = vunpack.c.h.b16 %v1325
        %v1743 = vunpack.c.l.b16 %v1326
        %v1744 = vunpack.c.h.b16 %v1326
        %v1745 = vunpack.c.l.b16 %v1327
        %v1746 = vunpack.c.h.b16 %v1327
        %v1747 = vunpack.c.l.b16 %v1328
        %v1748 = vunpack.c.h.b16 %v1328
        %v1749 = vunpack.c.l.b16 %v1329
        %v1750 = vunpack.c.h.b16 %v1329
        %v1751 = vunpack.c.l.b16 %v1330
        %v1752 = vunpack.c.h.b16 %v1330
        %v1753 = vunpack.c.l.b16 %v1331
        %v1754 = vunpack.c.h.b16 %v1331
        %v1755 = vunpack.c.l.b16 %v1332
        %v1756 = vunpack.c.h.b16 %v1332
        %v1757 = vunpack.c.l.b16 %v1333
        %v1758 = vunpack.c.h.b16 %v1333
        %v1759 = vunpack.c.l.b16 %v1334
        %v1760 = vunpack.c.h.b16 %v1334
        %v1761 = vunpack.c.l.b16 %v1335
        %v1762 = vunpack.c.h.b16 %v1335
        %v1763 = vunpack.c.l.b16 %v1336
        %v1764 = vunpack.c.h.b16 %v1336
        %v1765 = vunpack.c.l.b16 %v1337
        %v1766 = vunpack.c.h.b16 %v1337
        %v1767 = vunpack.c.l.b16 %v1338
        %v1768 = vunpack.c.h.b16 %v1338
        %v1769 = vunpack.c.l.b16 %v1339
        %v1770 = vunpack.c.h.b16 %v1339
        %v1771 = vunpack.c.l.b16 %v1340
        %v1772 = vunpack.c.h.b16 %v1340
        %v1773 = vpack.c.b16 %v1493, %v1485
        %v1774 = vpack.c.b16 %v1494, %v1486
        %v1775 = vpack.c.b16 %v1495, %v1487
        %v1776 = vpack.c.b16 %v1496, %v1488
        %v1777 = vpack.c.b16 %v1497, %v1489
        %v1778 = vpack.c.b16 %v1498, %v1490
        %v1779 = vpack.c.b16 %v1499, %v1491
        %v1780 = vpack.c.b16 %v1500, %v1492
        %v1781 = vpack.c.b16 %v1509, %v1501
        %v1782 = vpack.c.b16 %v1510, %v1502
        %v1783 = vpack.c.b16 %v1511, %v1503
        %v1784 = vpack.c.b16 %v1512, %v1504
        %v1785 = vpack.c.b16 %v1513, %v1505
        %v1786 = vpack.c.b16 %v1514, %v1506
        %v1787 = vpack.c.b16 %v1515, %v1507
        %v1788 = vpack.c.b16 %v1516, %v1508
        %v1789 = vpack.c.b16 %v1525, %v1517
        %v1790 = vpack.c.b16 %v1526, %v1518
        %v1791 = vpack.c.b16 %v1527, %v1519
        %v1792 = vpack.c.b16 %v1528, %v1520
        %v1793 = vpack.c.b16 %v1529, %v1521
        %v1794 = vpack.c.b16 %v1530, %v1522
        %v1795 = vpack.c.b16 %v1531, %v1523
        %v1796 = vpack.c.b16 %v1532, %v1524
        %v1797 = vpack.c.b16 %v1541, %v1533
        %v1798 = vpack.c.b16 %v1542, %v1534
        %v1799 = vpack.c.b16 %v1543, %v1535
        %v1800 = vpack.c.b16 %v1544, %v1536
        %v1801 = vpack.c.b16 %v1545, %v1537
        %v1802 = vpack.c.b16 %v1546, %v1538
        %v1803 = vpack.c.b16 %v1547, %v1539
        %v1804 = vpack.c.b16 %v1548, %v1540
        %v1805 = vpack.c.b16 %v1557, %v1549
        %v1806 = vpack.c.b16 %v1558, %v1550
        %v1807 = vpack.c.b16 %v1559, %v1551
        %v1808 = vpack.c.b16 %v1560, %v1552
        %v1809 = vpack.c.b16 %v1561, %v1553
        %v1810 = vpack.c.b16 %v1562, %v1554
        %v1811 = vpack.c.b16 %v1563, %v1555
        %v1812 = vpack.c.b16 %v1564, %v1556
        %v1813 = vpack.c.b16 %v1573, %v1565
        %v1814 = vpack.c.b16 %v1574, %v1566
        %v1815 = vpack.c.b16 %v1575, %v1567
        %v1816 = vpack.c.b16 %v1576, %v1568
        %v1817 = vpack.c.b16 %v1577, %v1569
        %v1818 = vpack.c.b16 %v1578, %v1570
        %v1819 = vpack.c.b16 %v1579, %v1571
        %v1820 = vpack.c.b16 %v1580, %v1572
        %v1821 = vpack.c.b16 %v1589, %v1581
        %v1822 = vpack.c.b16 %v1590, %v1582
        %v1823 = vpack.c.b16 %v1591, %v1583
        %v1824 = vpack.c.b16 %v1592, %v1584
        %v1825 = vpack.c.b16 %v1593, %v1585
        %v1826 = vpack.c.b16 %v1594, %v1586
        %v1827 = vpack.c.b16 %v1595, %v1587
        %v1828 = vpack.c.b16 %v1596, %v1588
        %v1829 = vpack.c.b16 %v1605, %v1597
        %v1830 = vpack.c.b16 %v1606, %v1598
        %v1831 = vpack.c.b16 %v1607, %v1599
        %v1832 = vpack.c.b16 %v1608, %v1600
        %v1833 = vpack.c.b16 %v1609, %v1601
        %v1834 = vpack.c.b16 %v1610, %v1602
        %v1835 = vpack.c.b16 %v1611, %v1603
        %v1836 = vpack.c.b16 %v1612, %v1604
        %v1837 = vpack.c.b16 %v1621, %v1613
        %v1838 = vpack.c.b16 %v1622, %v1614
        %v1839 = vpack.c.b16 %v1623, %v1615
        %v1840 = vpack.c.b16 %v1624, %v1616
        %v1841 = vpack.c.b16 %v1625, %v1617
        %v1842 = vpack.c.b16 %v1626, %v1618
        %v1843 = vpack.c.b16 %v1627, %v1619
        %v1844 = vpack.c.b16 %v1628, %v1620
        %v1845 = vpack.c.b16 %v1637, %v1629
        %v1846 = vpack.c.b16 %v1638, %v1630
        %v1847 = vpack.c.b16 %v1639, %v1631
        %v1848 = vpack.c.b16 %v1640, %v1632
        %v1849 = vpack.c.b16 %v1641, %v1633
        %v1850 = vpack.c.b16 %v1642, %v1634
        %v1851 = vpack.c.b16 %v1643, %v1635
        %v1852 = vpack.c.b16 %v1644, %v1636
        %v1853 = vpack.c.b16 %v1653, %v1645
        %v1854 = vpack.c.b16 %v1654, %v1646
        %v1855 = vpack.c.b16 %v1655, %v1647
        %v1856 = vpack.c.b16 %v1656, %v1648
        %v1857 = vpack.c.b16 %v1657, %v1649
        %v1858 = vpack.c.b16 %v1658, %v1650
        %v1859 = vpack.c.b16 %v1659, %v1651
        %v1860 = vpack.c.b16 %v1660, %v1652
        %v1861 = vpack.c.b16 %v1669, %v1661
        %v1862 = vpack.c.b16 %v1670, %v1662
        %v1863 = vpack.c.b16 %v1671, %v1663
        %v1864 = vpack.c.b16 %v1672, %v1664
        %v1865 = vpack.c.b16 %v1673, %v1665
        %v1866 = vpack.c.b16 %v1674, %v1666
        %v1867 = vpack.c.b16 %v1675, %v1667
        %v1868 = vpack.c.b16 %v1676, %v1668
        %v1869 = vpack.c.b16 %v1685, %v1677
        %v1870 = vpack.c.b16 %v1686, %v1678
        %v1871 = vpack.c.b16 %v1687, %v1679
        %v1872 = vpack.c.b16 %v1688, %v1680
        %v1873 = vpack.c.b16 %v1689, %v1681
        %v1874 = vpack.c.b16 %v1690, %v1682
        %v1875 = vpack.c.b16 %v1691, %v1683
        %v1876 = vpack.c.b16 %v1692, %v1684
        %v1877 = vpack.c.b16 %v1701, %v1693
        %v1878 = vpack.c.b16 %v1702, %v1694
        %v1879 = vpack.c.b16 %v1703, %v1695
        %v1880 = vpack.c.b16 %v1704, %v1696
        %v1881 = vpack.c.b16 %v1705, %v1697
        %v1882 = vpack.c.b16 %v1706, %v1698
        %v1883 = vpack.c.b16 %v1707, %v1699
        %v1884 = vpack.c.b16 %v1708, %v1700
        %v1885 = vpack.c.b16 %v1717, %v1709
        %v1886 = vpack.c.b16 %v1718, %v1710
        %v1887 = vpack.c.b16 %v1719, %v1711
        %v1888 = vpack.c.b16 %v1720, %v1712
        %v1889 = vpack.c.b16 %v1721, %v1713
        %v1890 = vpack.c.b16 %v1722, %v1714
        %v1891 = vpack.c.b16 %v1723, %v1715
        %v1892 = vpack.c.b16 %v1724, %v1716
        %v1893 = vpack.c.b16 %v1733, %v1725
        %v1894 = vpack.c.b16 %v1734, %v1726
        %v1895 = vpack.c.b16 %v1735, %v1727
        %v1896 = vpack.c.b16 %v1736, %v1728
        %v1897 = vpack.c.b16 %v1737, %v1729
        %v1898 = vpack.c.b16 %v1738, %v1730
        %v1899 = vpack.c.b16 %v1739, %v1731
        %v1900 = vpack.c.b16 %v1740, %v1732
        %v1901 = vpack.c.b16 %v1749, %v1741
        %v1902 = vpack.c.b16 %v1750, %v1742
        %v1903 = vpack.c.b16 %v1751, %v1743
        %v1904 = vpack.c.b16 %v1752, %v1744
        %v1905 = vpack.c.b16 %v1753, %v1745
        %v1906 = vpack.c.b16 %v1754, %v1746
        %v1907 = vpack.c.b16 %v1755, %v1747
        %v1908 = vpack.c.b16 %v1756, %v1748
        %v1909 = vpack.c.b16 %v1765, %v1757
        %v1910 = vpack.c.b16 %v1766, %v1758
        %v1911 = vpack.c.b16 %v1767, %v1759
        %v1912 = vpack.c.b16 %v1768, %v1760
        %v1913 = vpack.c.b16 %v1769, %v1761
        %v1914 = vpack.c.b16 %v1770, %v1762
        %v1915 = vpack.c.b16 %v1771, %v1763
        %v1916 = vpack.c.b16 %v1772, %v1764
        %vm2053 = vcmask 244736
        %v2055 = vsel %vm2053, %v1196, 0
        %vm2057 = vcmask 1046528
        %v2059 = vsel %vm2057, %v1909, 0
        %v2062 = vsel %vm2057, %v1910, 0
        %v2065 = vsel %vm2057, %v1911, 0
        %v2068 = vsel %vm2057, %v1912, 0
        %v2071 = vsel %vm2057, %v1913, 0
        %v2074 = vsel %vm2057, %v1914, 0
        %v2077 = vsel %vm2057, %v1915, 0
        %v2080 = vsel %vm2057, %v1916, 0
        %2082 = vmatprep.subr.bf16.mxu0 %v1774
        %2083 = vmatpush1.bf16.msra.mxu0 %v1773
        %2084 = vmatprep.subr.bf16.mxu0 %v1782
        %2085 = vmatpush1.bf16.msra.mxu0 %v1781
        %2086 = vmatprep.subr.bf16.mxu0 %v1790
        %2087 = vmatpush1.bf16.msra.mxu0 %v1789
        %2088 = vmatprep.subr.bf16.mxu0 %v1798
        %2089 = vmatpush1.bf16.msra.mxu0 %v1797
        %2090 = vmatprep.subr.bf16.mxu0 %v1806
        %2091 = vmatpush1.bf16.msra.mxu0 %v1805
        %2092 = vmatprep.subr.bf16.mxu0 %v1814
        %2093 = vmatpush1.bf16.msra.mxu0 %v1813
        %2094 = vmatprep.subr.bf16.mxu0 %v1822
        %2095 = vmatpush1.bf16.msra.mxu0 %v1821
        %2096 = vmatprep.subr.bf16.mxu0 %v1830
        %2097 = vmatpush1.bf16.msra.mxu0 %v1829
        %2098 = vmatprep.subr.bf16.mxu0 %v1838
        %2099 = vmatpush1.bf16.msra.mxu0 %v1837
        %2100 = vmatprep.subr.bf16.mxu0 %v1846
        %2101 = vmatpush1.bf16.msra.mxu0 %v1845
        %2102 = vmatprep.subr.bf16.mxu0 %v1854
        %2103 = vmatpush1.bf16.msra.mxu0 %v1853
        %2104 = vmatprep.subr.bf16.mxu0 %v1862
        %2105 = vmatpush1.bf16.msra.mxu0 %v1861
        %2106 = vmatprep.subr.bf16.mxu0 %v1870
        %2107 = vmatpush1.bf16.msra.mxu0 %v1869
        %2108 = vmatprep.subr.bf16.mxu0 %v1878
        %2109 = vmatpush1.bf16.msra.mxu0 %v1877
        %2110 = vmatprep.subr.bf16.mxu0 %v1886
        %2111 = vmatpush1.bf16.msra.mxu0 %v1885
        %2112 = vmatprep.subr.bf16.mxu0 %v1894
        %2113 = vmatpush1.bf16.msra.mxu0 %v1893
        %2114 = vmatprep.mubr.bf16.mxu0 %v1195
        %2115 = vmatmul.mubr.bf16.gmra.mrb[0].mxu0 %v1194
        %v2116 = vpop.f32.mrb[0].mxu0
        %v2117 = vadd.f32 0.0, %v2116
        %v2118 = vpop.f32.mrb[0].mxu0
        %v2119 = vadd.f32 0.0, %v2118
        %v2120 = vpop.f32.mrb[0].mxu0
        %v2121 = vpop.f32.mrb[0].mxu0
        %2122 = vdwg.mxu0
        %2123 = vmatprep.subr.bf16.mxu0 %v1902
        %2124 = vmatpush1.bf16.msra.mxu0 %v1901
        %2125 = vmatprep.subr.bf16.mxu0 %v2062
        %2126 = vmatpush1.bf16.msra.mxu0 %v2059
        %2127 = vmatprep.subr.bf16.mxu0 0
        %2128 = vmatpush1.bf16.msra.mxu0 0
        %2129 = vmatprep.subr.bf16.mxu0 0
        %2130 = vmatpush1.bf16.msra.mxu0 0
        %2131 = vmatprep.subr.bf16.mxu0 0
        %2132 = vmatpush1.bf16.msra.mxu0 0
        %2133 = vmatprep.subr.bf16.mxu0 0
        %2134 = vmatpush1.bf16.msra.mxu0 0
        %2135 = vmatprep.subr.bf16.mxu0 0
        %2136 = vmatpush1.bf16.msra.mxu0 0
        %2137 = vmatprep.subr.bf16.mxu0 0
        %2138 = vmatpush1.bf16.msra.mxu0 0
        %2139 = vmatprep.subr.bf16.mxu0 0
        %2140 = vmatpush1.bf16.msra.mxu0 0
        %2141 = vmatprep.subr.bf16.mxu0 0
        %2142 = vmatpush1.bf16.msra.mxu0 0
        %2143 = vmatprep.subr.bf16.mxu0 0
        %2144 = vmatpush1.bf16.msra.mxu0 0
        %2145 = vmatprep.subr.bf16.mxu0 0
        %2146 = vmatpush1.bf16.msra.mxu0 0
        %2147 = vmatprep.subr.bf16.mxu0 0
        %2148 = vmatpush1.bf16.msra.mxu0 0
        %2149 = vmatprep.subr.bf16.mxu0 0
        %2150 = vmatpush1.bf16.msra.mxu0 0
        %2151 = vmatprep.subr.bf16.mxu0 0
        %2152 = vmatpush1.bf16.msra.mxu0 0
        %2153 = vmatprep.subr.bf16.mxu0 0
        %2154 = vmatpush1.bf16.msra.mxu0 0
        %2155 = vmatprep.mubr.bf16.mxu0 0
        %2156 = vmatmul.mubr.bf16.gmra.mrb[0].mxu0 %v2055
        %v2157 = vpop.f32.mrb[0].mxu0
        %v2158 = vadd.f32 %v2117, %v2157
        %v2159 = vpop.f32.mrb[0].mxu0
        %v2160 = vadd.f32 %v2119, %v2159
        %v2161 = vpop.f32.mrb[0].mxu0
        %v2162 = vpop.f32.mrb[0].mxu0
        %2163 = vdwg.mxu0
        %2164 = vmatprep.subr.bf16.mxu0 %v1776
        %2165 = vmatpush1.bf16.msra.mxu0 %v1775
        %2166 = vmatprep.subr.bf16.mxu0 %v1784
        %2167 = vmatpush1.bf16.msra.mxu0 %v1783
        %2168 = vmatprep.subr.bf16.mxu0 %v1792
        %2169 = vmatpush1.bf16.msra.mxu0 %v1791
        %2170 = vmatprep.subr.bf16.mxu0 %v1800
        %2171 = vmatpush1.bf16.msra.mxu0 %v1799
        %2172 = vmatprep.subr.bf16.mxu0 %v1808
        %2173 = vmatpush1.bf16.msra.mxu0 %v1807
        %2174 = vmatprep.subr.bf16.mxu0 %v1816
        %2175 = vmatpush1.bf16.msra.mxu0 %v1815
        %2176 = vmatprep.subr.bf16.mxu0 %v1824
        %2177 = vmatpush1.bf16.msra.mxu0 %v1823
        %2178 = vmatprep.subr.bf16.mxu0 %v1832
        %2179 = vmatpush1.bf16.msra.mxu0 %v1831
        %2180 = vmatprep.subr.bf16.mxu0 %v1840
        %2181 = vmatpush1.bf16.msra.mxu0 %v1839
        %2182 = vmatprep.subr.bf16.mxu0 %v1848
        %2183 = vmatpush1.bf16.msra.mxu0 %v1847
        %2184 = vmatprep.subr.bf16.mxu0 %v1856
        %2185 = vmatpush1.bf16.msra.mxu0 %v1855
        %2186 = vmatprep.subr.bf16.mxu0 %v1864
        %2187 = vmatpush1.bf16.msra.mxu0 %v1863
        %2188 = vmatprep.subr.bf16.mxu0 %v1872
        %2189 = vmatpush1.bf16.msra.mxu0 %v1871
        %2190 = vmatprep.subr.bf16.mxu0 %v1880
        %2191 = vmatpush1.bf16.msra.mxu0 %v1879
        %2192 = vmatprep.subr.bf16.mxu0 %v1888
        %2193 = vmatpush1.bf16.msra.mxu0 %v1887
        %2194 = vmatprep.subr.bf16.mxu0 %v1896
        %2195 = vmatpush1.bf16.msra.mxu0 %v1895
        %2196 = vmatprep.mubr.bf16.mxu0 %v1195
        %2197 = vmatmul.mubr.bf16.gmra.mrb[0].mxu0 %v1194
        %v2198 = vpop.f32.mrb[0].mxu0
        %v2199 = vadd.f32 0.0, %v2198
        %v2200 = vpop.f32.mrb[0].mxu0
        %v2201 = vadd.f32 0.0, %v2200
        %v2202 = vpop.f32.mrb[0].mxu0
        %v2203 = vpop.f32.mrb[0].mxu0
        %2204 = vdwg.mxu0
        %2205 = vmatprep.subr.bf16.mxu0 %v1904
        %2206 = vmatpush1.bf16.msra.mxu0 %v1903
        %2207 = vmatprep.subr.bf16.mxu0 %v2068
        %2208 = vmatpush1.bf16.msra.mxu0 %v2065
        %2209 = vmatprep.subr.bf16.mxu0 0
        %2210 = vmatpush1.bf16.msra.mxu0 0
        %2211 = vmatprep.subr.bf16.mxu0 0
        %2212 = vmatpush1.bf16.msra.mxu0 0
        %2213 = vmatprep.subr.bf16.mxu0 0
        %2214 = vmatpush1.bf16.msra.mxu0 0
        %2215 = vmatprep.subr.bf16.mxu0 0
        %2216 = vmatpush1.bf16.msra.mxu0 0
        %2217 = vmatprep.subr.bf16.mxu0 0
        %2218 = vmatpush1.bf16.msra.mxu0 0
        %2219 = vmatprep.subr.bf16.mxu0 0
        %2220 = vmatpush1.bf16.msra.mxu0 0
        %2221 = vmatprep.subr.bf16.mxu0 0
        %2222 = vmatpush1.bf16.msra.mxu0 0
        %2223 = vmatprep.subr.bf16.mxu0 0
        %2224 = vmatpush1.bf16.msra.mxu0 0
        %2225 = vmatprep.subr.bf16.mxu0 0
        %2226 = vmatpush1.bf16.msra.mxu0 0
        %2227 = vmatprep.subr.bf16.mxu0 0
        %2228 = vmatpush1.bf16.msra.mxu0 0
        %2229 = vmatprep.subr.bf16.mxu0 0
        %2230 = vmatpush1.bf16.msra.mxu0 0
        %2231 = vmatprep.subr.bf16.mxu0 0
        %2232 = vmatpush1.bf16.msra.mxu0 0
        %2233 = vmatprep.subr.bf16.mxu0 0
        %2234 = vmatpush1.bf16.msra.mxu0 0
        %2235 = vmatprep.subr.bf16.mxu0 0
        %2236 = vmatpush1.bf16.msra.mxu0 0
        %2237 = vmatprep.mubr.bf16.mxu0 0
        %2238 = vmatmul.mubr.bf16.gmra.mrb[0].mxu0 %v2055
        %v2239 = vpop.f32.mrb[0].mxu0
        %v2240 = vadd.f32 %v2199, %v2239
        %v2241 = vpop.f32.mrb[0].mxu0
        %v2242 = vadd.f32 %v2201, %v2241
        %v2243 = vpop.f32.mrb[0].mxu0
        %v2244 = vpop.f32.mrb[0].mxu0
        %2245 = vdwg.mxu0
        %2246 = vmatprep.subr.bf16.mxu0 %v1778
        %2247 = vmatpush1.bf16.msra.mxu0 %v1777
        %2248 = vmatprep.subr.bf16.mxu0 %v1786
        %2249 = vmatpush1.bf16.msra.mxu0 %v1785
        %2250 = vmatprep.subr.bf16.mxu0 %v1794
        %2251 = vmatpush1.bf16.msra.mxu0 %v1793
        %2252 = vmatprep.subr.bf16.mxu0 %v1802
        %2253 = vmatpush1.bf16.msra.mxu0 %v1801
        %2254 = vmatprep.subr.bf16.mxu0 %v1810
        %2255 = vmatpush1.bf16.msra.mxu0 %v1809
        %2256 = vmatprep.subr.bf16.mxu0 %v1818
        %2257 = vmatpush1.bf16.msra.mxu0 %v1817
        %2258 = vmatprep.subr.bf16.mxu0 %v1826
        %2259 = vmatpush1.bf16.msra.mxu0 %v1825
        %2260 = vmatprep.subr.bf16.mxu0 %v1834
        %2261 = vmatpush1.bf16.msra.mxu0 %v1833
        %2262 = vmatprep.subr.bf16.mxu0 %v1842
        %2263 = vmatpush1.bf16.msra.mxu0 %v1841
        %2264 = vmatprep.subr.bf16.mxu0 %v1850
        %2265 = vmatpush1.bf16.msra.mxu0 %v1849
        %2266 = vmatprep.subr.bf16.mxu0 %v1858
        %2267 = vmatpush1.bf16.msra.mxu0 %v1857
        %2268 = vmatprep.subr.bf16.mxu0 %v1866
        %2269 = vmatpush1.bf16.msra.mxu0 %v1865
        %2270 = vmatprep.subr.bf16.mxu0 %v1874
        %2271 = vmatpush1.bf16.msra.mxu0 %v1873
        %2272 = vmatprep.subr.bf16.mxu0 %v1882
        %2273 = vmatpush1.bf16.msra.mxu0 %v1881
        %2274 = vmatprep.subr.bf16.mxu0 %v1890
        %2275 = vmatpush1.bf16.msra.mxu0 %v1889
        %2276 = vmatprep.subr.bf16.mxu0 %v1898
        %2277 = vmatpush1.bf16.msra.mxu0 %v1897
        %2278 = vmatprep.mubr.bf16.mxu0 %v1195
        %2279 = vmatmul.mubr.bf16.gmra.mrb[0].mxu0 %v1194
        %v2280 = vpop.f32.mrb[0].mxu0
        %v2281 = vadd.f32 0.0, %v2280
        %v2282 = vpop.f32.mrb[0].mxu0
        %v2283 = vadd.f32 0.0, %v2282
        %v2284 = vpop.f32.mrb[0].mxu0
        %v2285 = vpop.f32.mrb[0].mxu0
        %2286 = vdwg.mxu0
        %2287 = vmatprep.subr.bf16.mxu0 %v1906
        %2288 = vmatpush1.bf16.msra.mxu0 %v1905
        %2289 = vmatprep.subr.bf16.mxu0 %v2074
        %2290 = vmatpush1.bf16.msra.mxu0 %v2071
        %2291 = vmatprep.subr.bf16.mxu0 0
        %2292 = vmatpush1.bf16.msra.mxu0 0
        %2293 = vmatprep.subr.bf16.mxu0 0
        %2294 = vmatpush1.bf16.msra.mxu0 0
        %2295 = vmatprep.subr.bf16.mxu0 0
        %2296 = vmatpush1.bf16.msra.mxu0 0
        %2297 = vmatprep.subr.bf16.mxu0 0
        %2298 = vmatpush1.bf16.msra.mxu0 0
        %2299 = vmatprep.subr.bf16.mxu0 0
        %2300 = vmatpush1.bf16.msra.mxu0 0
        %2301 = vmatprep.subr.bf16.mxu0 0
        %2302 = vmatpush1.bf16.msra.mxu0 0
        %2303 = vmatprep.subr.bf16.mxu0 0
        %2304 = vmatpush1.bf16.msra.mxu0 0
        %2305 = vmatprep.subr.bf16.mxu0 0
        %2306 = vmatpush1.bf16.msra.mxu0 0
        %2307 = vmatprep.subr.bf16.mxu0 0
        %2308 = vmatpush1.bf16.msra.mxu0 0
        %2309 = vmatprep.subr.bf16.mxu0 0
        %2310 = vmatpush1.bf16.msra.mxu0 0
        %2311 = vmatprep.subr.bf16.mxu0 0
        %2312 = vmatpush1.bf16.msra.mxu0 0
        %2313 = vmatprep.subr.bf16.mxu0 0
        %2314 = vmatpush1.bf16.msra.mxu0 0
        %2315 = vmatprep.subr.bf16.mxu0 0
        %2316 = vmatpush1.bf16.msra.mxu0 0
        %2317 = vmatprep.subr.bf16.mxu0 0
        %2318 = vmatpush1.bf16.msra.mxu0 0
        %2319 = vmatprep.mubr.bf16.mxu0 0
        %2320 = vmatmul.mubr.bf16.gmra.mrb[0].mxu0 %v2055
        %v2321 = vpop.f32.mrb[0].mxu0
        %v2322 = vadd.f32 %v2281, %v2321
        %v2323 = vpop.f32.mrb[0].mxu0
        %v2324 = vadd.f32 %v2283, %v2323
        %v2325 = vpop.f32.mrb[0].mxu0
        %v2326 = vpop.f32.mrb[0].mxu0
        %2327 = vdwg.mxu0
        %2328 = vmatprep.subr.bf16.mxu0 %v1780
        %2329 = vmatpush1.bf16.msra.mxu0 %v1779
        %2330 = vmatprep.subr.bf16.mxu0 %v1788
        %2331 = vmatpush1.bf16.msra.mxu0 %v1787
        %2332 = vmatprep.subr.bf16.mxu0 %v1796
        %2333 = vmatpush1.bf16.msra.mxu0 %v1795
        %2334 = vmatprep.subr.bf16.mxu0 %v1804
        %2335 = vmatpush1.bf16.msra.mxu0 %v1803
        %2336 = vmatprep.subr.bf16.mxu0 %v1812
        %2337 = vmatpush1.bf16.msra.mxu0 %v1811
        %2338 = vmatprep.subr.bf16.mxu0 %v1820
        %2339 = vmatpush1.bf16.msra.mxu0 %v1819
        %2340 = vmatprep.subr.bf16.mxu0 %v1828
        %2341 = vmatpush1.bf16.msra.mxu0 %v1827
        %2342 = vmatprep.subr.bf16.mxu0 %v1836
        %2343 = vmatpush1.bf16.msra.mxu0 %v1835
        %2344 = vmatprep.subr.bf16.mxu0 %v1844
        %2345 = vmatpush1.bf16.msra.mxu0 %v1843
        %2346 = vmatprep.subr.bf16.mxu0 %v1852
        %2347 = vmatpush1.bf16.msra.mxu0 %v1851
        %2348 = vmatprep.subr.bf16.mxu0 %v1860
        %2349 = vmatpush1.bf16.msra.mxu0 %v1859
        %2350 = vmatprep.subr.bf16.mxu0 %v1868
        %2351 = vmatpush1.bf16.msra.mxu0 %v1867
        %2352 = vmatprep.subr.bf16.mxu0 %v1876
        %2353 = vmatpush1.bf16.msra.mxu0 %v1875
        %2354 = vmatprep.subr.bf16.mxu0 %v1884
        %2355 = vmatpush1.bf16.msra.mxu0 %v1883
        %2356 = vmatprep.subr.bf16.mxu0 %v1892
        %2357 = vmatpush1.bf16.msra.mxu0 %v1891
        %2358 = vmatprep.subr.bf16.mxu0 %v1900
        %2359 = vmatpush1.bf16.msra.mxu0 %v1899
        %2360 = vmatprep.mubr.bf16.mxu0 %v1195
        %2361 = vmatmul.mubr.bf16.gmra.mrb[0].mxu0 %v1194
        %v2362 = vpop.f32.mrb[0].mxu0
        %v2363 = vadd.f32 0.0, %v2362
        %v2364 = vpop.f32.mrb[0].mxu0
        %v2365 = vadd.f32 0.0, %v2364
        %v2366 = vpop.f32.mrb[0].mxu0
        %v2367 = vpop.f32.mrb[0].mxu0
        %2368 = vdwg.mxu0
        %2369 = vmatprep.subr.bf16.mxu0 %v1908
        %2370 = vmatpush1.bf16.msra.mxu0 %v1907
        %2371 = vmatprep.subr.bf16.mxu0 %v2080
        %2372 = vmatpush1.bf16.msra.mxu0 %v2077
        %2373 = vmatprep.subr.bf16.mxu0 0
        %2374 = vmatpush1.bf16.msra.mxu0 0
        %2375 = vmatprep.subr.bf16.mxu0 0
        %2376 = vmatpush1.bf16.msra.mxu0 0
        %2377 = vmatprep.subr.bf16.mxu0 0
        %2378 = vmatpush1.bf16.msra.mxu0 0
        %2379 = vmatprep.subr.bf16.mxu0 0
        %2380 = vmatpush1.bf16.msra.mxu0 0
        %2381 = vmatprep.subr.bf16.mxu0 0
        %2382 = vmatpush1.bf16.msra.mxu0 0
        %2383 = vmatprep.subr.bf16.mxu0 0
        %2384 = vmatpush1.bf16.msra.mxu0 0
        %2385 = vmatprep.subr.bf16.mxu0 0
        %2386 = vmatpush1.bf16.msra.mxu0 0
        %2387 = vmatprep.subr.bf16.mxu0 0
        %2388 = vmatpush1.bf16.msra.mxu0 0
        %2389 = vmatprep.subr.bf16.mxu0 0
        %2390 = vmatpush1.bf16.msra.mxu0 0
        %2391 = vmatprep.subr.bf16.mxu0 0
        %2392 = vmatpush1.bf16.msra.mxu0 0
        %2393 = vmatprep.subr.bf16.mxu0 0
        %2394 = vmatpush1.bf16.msra.mxu0 0
        %2395 = vmatprep.subr.bf16.mxu0 0
        %2396 = vmatpush1.bf16.msra.mxu0 0
        %2397 = vmatprep.subr.bf16.mxu0 0
        %2398 = vmatpush1.bf16.msra.mxu0 0
        %2399 = vmatprep.subr.bf16.mxu0 0
        %2400 = vmatpush1.bf16.msra.mxu0 0
        %2401 = vmatprep.mubr.bf16.mxu0 0
        %2402 = vmatmul.mubr.bf16.gmra.mrb[0].mxu0 %v2055
        %v2403 = vpop.f32.mrb[0].mxu0
        %v2404 = vadd.f32 %v2363, %v2403
        %v2405 = vpop.f32.mrb[0].mxu0
        %v2406 = vadd.f32 %v2365, %v2405
        %v2407 = vpop.f32.mrb[0].mxu0
        %v2408 = vpop.f32.mrb[0].mxu0
        %2409 = vdwg.mxu0
        %v2410 = vmax.f32 %v2158, 0.0
        %v2411 = vmax.f32 %v2160, 0.0
        %v2412 = vmax.f32 %v2240, 0.0
        %v2413 = vmax.f32 %v2242, 0.0
        %v2414 = vmax.f32 %v2322, 0.0
        %v2415 = vmax.f32 %v2324, 0.0
        %v2416 = vmax.f32 %v2404, 0.0
        %v2417 = vmax.f32 %v2406, 0.0
        %v2426 = vcombine.low %v2410, %v2411
        %v2427 = vcombine.low %v2412, %v2413
        %v2428 = vcombine.low %v2414, %v2415
        %v2429 = vcombine.low %v2416, %v2417
        %2434 = vst [vmem:[%s309] sm:$0xff] %v2426
        %2435 = vst [vmem:[%s309 + $0x8] sm:$0xff] %v2427
        %2436 = vst [vmem:[%s309 + $0x10] sm:$0xff] %v2428
        %2437 = vst [vmem:[%s309 + $0x18] sm:$0xff] %v2429
        %s2438 = sand.u32 %s185, 1
        %s2439 = scalar_lea.sflag [#allocation6], %s2438
        %s2440 = sand.u32 %s185, 1
        %s2441 = smul.addr %s2440, 32
        %s2442 = scalar_lea.vmem [#allocation9], %s2441
        // Predicated region
        $region57: #{tpu_custom_call.1} parent=47 // pred_check
          %p2443 = pneg %p195
        $region58: #{tpu_custom_call.1} parent=47 // pred_check_branch
          %2445 = sbr.rel (%p2443) target = $region60
        $region59: #{tpu_custom_call.1} parent=47 // pred_region
          %s2447 = ssub.s32 512, 512
          %2448 = vsyncadd %s2439, %s2447
          %s2449 = smul.addr %s25, 8
          %s2450 = smul.addr %s2449, 64
          %s2451 = scalar_lea.hbm %s7, %s2450
          %s2453 = sshll.u32 %s2442, 4
          %s2454 = int_to_ptr.vmem [resolvable:$true] %s2453
          %2456 = dma.vmem_to_hbm [thread:$0]  %s2454, 512, %s2451, %s2439
        $region60: #{tpu_custom_call.1} parent=47 // pred_fallthru
          _
      $region48: #{tpu_custom_call.1} parent=5 // pred_fallthru
        _
      %p2457 = scmp.le.s32.totalorder 2, %s20
      // Predicated region
      $region61: #{tpu_custom_call.1} parent=5 // pred_check
        %p2458 = pneg %p2457
      $region62: #{tpu_custom_call.1} parent=5 // pred_check_branch
        %2460 = sbr.rel (%p2458) target = $region64
      $region63: #{tpu_custom_call.1} parent=5 // pred_region
        %s2461 = ssub.s32 %s20, 2
        // Predicated region
        $region65: #{tpu_custom_call.1} parent=63 // pred_check
          %p2462 = pneg %p201
        $region66: #{tpu_custom_call.1} parent=63 // pred_check_branch
          %2464 = sbr.rel (%p2462) target = $region68
        $region67: #{tpu_custom_call.1} parent=63 // pred_region
          %s2465 = sand.u32 %s186, 1
          %s2466 = scalar_lea.sflag [#allocation6], %s2465
          %s2467 = sand.u32 %s186, 1
          %s2468 = smul.addr %s2467, 32
          %s2469 = scalar_lea.vmem [#allocation9], %s2468
          %2470 = dma.done %s2466, 512
        $region68: #{tpu_custom_call.1} parent=63 // pred_fallthru
          _
      $region64: #{tpu_custom_call.1} parent=5 // pred_fallthru
        _
    $region6: #{tpu_custom_call.1} parent=1 // loop_footer
      %s24 = sadd.s32 1, %s20
    $region7: #{tpu_custom_call.1} parent=1 // loop_footer_branch
      %19 = sbr.rel target = $region3
    $region8: #{tpu_custom_call.1} parent=1 // loop_exit
      _
    %2471 = vsyncpa [#allocation5], 1
    %s2472 = scalar_lea.sflag [#allocation5], 1
    %2473 = vsyncpa %s2472, 1
    %2474 = vsyncpa [#allocation8], 1
    %2475 = vsyncpa [#allocation6], 1
    %s2476 = scalar_lea.sflag [#allocation6], 1
    %2477 = vsyncpa %s2476, 1

</llo_original>
